<compile_context>
chip_gen: v5e
topology: v5e:2x2
jax: 0.10.0
libtpu: 0.0.40
codegen_flags: <defaults>
</compile_context>

<pallas_src>
import functools

import numpy as np
import jax
import jax.numpy as jnp
from jax import lax
from jax.experimental import pallas as pl
from jax.experimental.pallas import tpu as pltpu


# ------------------------------------------------------------------ kernel --

def _encoder_kernel(x_ref, w1a_ref, w1b_ref, w1c_ref, b1_ref,
                    w2a_ref, w2b_ref, b2_ref,
                    w3t_ref, b3_ref, wpt_ref, bp_ref,
                    o_ref, s2_ref, s3_ref, *,
                    B, U1, L1, L2, HO2, OUT2, L3):
    f32, bf16 = jnp.float32, jnp.bfloat16
    zrow2 = jnp.zeros((B, 1, L2), bf16)

    # ---- conv1: 4x4 / stride 2 / pad 1 (+ReLU) -------------------------------------------
    # Even output rows: all 4 kh taps live in one folded input row-group -> single K=4*L1 dot.
    x_even = x_ref[:, 0:U1, :].reshape(B * U1, 4 * L1)
    h_even = jnp.dot(x_even, w1a_ref[...], preferred_element_type=f32) + b1_ref[...]
    h_even = jnp.maximum(h_even, 0.0).astype(bf16).reshape(B, U1, L2)
    # These are slot 1 of conv2-input row-pair groups 0..U1-1; group U1 slot 1 is the bottom
    # zero halo -> build the full column in registers and store the lane slice [L2:2*L2] once.
    s2_ref[:, :, L2:2 * L2] = jnp.concatenate([h_even, zrow2], axis=1)

    # Odd output rows: taps straddle two adjacent folded groups -> two K=2*L1 dots.
    x_odd_lo = x_ref[:, 0:U1, 2 * L1:4 * L1].reshape(B * U1, 2 * L1)
    x_odd_hi = x_ref[:, 1:U1 + 1, 0:2 * L1].reshape(B * U1, 2 * L1)
    h_odd = (jnp.dot(x_odd_lo, w1b_ref[...], preferred_element_type=f32)
             + jnp.dot(x_odd_hi, w1c_ref[...], preferred_element_type=f32)
             + b1_ref[...])
    h_odd = jnp.maximum(h_odd, 0.0).astype(bf16).reshape(B, U1, L2)
    # Slot 0 of groups 1..U1; group 0 slot 0 is the top zero halo.
    s2_ref[:, :, 0:L2] = jnp.concatenate([zrow2, h_odd], axis=1)

    # ---- conv2: 4x4 / stride 2 / pad 1 (+ReLU): two K=2*L2 dots ---------------------------
    a_lo = s2_ref[:, 0:HO2, :].reshape(B * HO2, 2 * L2)
    a_hi = s2_ref[:, 1:HO2 + 1, :].reshape(B * HO2, 2 * L2)
    z = (jnp.dot(a_lo, w2a_ref[...], preferred_element_type=f32)
         + jnp.dot(a_hi, w2b_ref[...], preferred_element_type=f32)
         + b2_ref[...])
    z = jnp.maximum(z, 0.0)                                   # (B*HO2, OUT2) f32

    # ---- 2x ResidualBlock: x + Conv1x1(ReLU(Conv3x3(ReLU(x), pad=1))) ---------------------
    # TODO(synk): ResidualBlock source was not provided; this is the canonical VQ-VAE block.
    zrow3 = jnp.zeros((B, 1, L3), bf16)
    for blk in range(2):
        s3_ref[...] = jnp.concatenate(
            [zrow3, jnp.maximum(z, 0.0).astype(bf16).reshape(B, HO2, L3), zrow3], axis=1)
        acc = jnp.zeros((B * HO2, OUT2), f32)
        for kh in range(3):
            acc = acc + jnp.dot(s3_ref[:, kh:kh + HO2, :].reshape(B * HO2, L3),
                                w3t_ref[blk, kh], preferred_element_type=f32)
        t_act = jnp.maximum(acc + b3_ref[blk], 0.0)
        z = z + jnp.dot(t_act.astype(bf16), wpt_ref[blk],
                        preferred_element_type=f32) + bp_ref[blk]

    o_ref[...] = z.reshape(B, HO2, OUT2).astype(o_ref.dtype)


# ------------------------------------------------------------------ host-side weight prep --

def _toeplitz_w(w, w_in, w_out, stride, pad):
    """(KH, KW, Cin, Cout) conv weight -> (KH, w_in*Cin, w_out*Cout).

    Toeplitz over the *unpadded* W axis with the zero padding folded into the weights:
    output column wo reads input column stride*wo + kw - pad; out-of-range taps simply drop
    out (they would have multiplied pad zeros)."""
    KH, KW, Cin, Cout = w.shape
    cols = np.arange(w_in)[:, None, None]
    kws = np.arange(KW)[None, :, None]
    wos = np.arange(w_out)[None, None, :]
    sel = jnp.asarray((cols == stride * wos + kws - pad).astype(np.float32))  # (w_in, KW, w_out)
    wt = jnp.einsum("pkv,hkio->hpivo", sel, w)                 # (KH, w_in, Cin, w_out, Cout)
    return wt.reshape(KH, w_in * Cin, w_out * Cout)


def _pick_batch_block(n, rows_per_sample, target_rows=256, max_block=32):
    """Largest divisor of n (<= max_block) keeping the folded matmul M <= target_rows."""
    best = 1
    for b in range(1, min(n, max_block) + 1):
        if n % b == 0 and b * rows_per_sample <= target_rows:
            best = b
    return best


def encoder_forward(x_nhwc, params, batch_block=None):
    N, H, W, Cin = x_nhwc.shape
    C1 = params["w_c1"].shape[-1]
    C2 = params["w_c2"].shape[-1]
    assert H % 4 == 0 and W % 4 == 0, "spatial dims must be divisible by 4"

    Ho1, Wo1 = H // 2, W // 2            # after conv1 (4x4, s2, p1)
    Ho2, Wo2 = Ho1 // 2, Wo1 // 2        # after conv2
    U1 = Ho1 // 2                        # conv1 output row-pairs per sample (== Ho2)
    G1 = U1 + 1                          # folded 4-row groups of the H-padded input
    R2 = Ho2 + 1                         # folded 2-row groups of conv2's H-padded input

    L1 = W * Cin                         # one unpadded-W input row, flattened
    L2 = Wo1 * C1                        # one conv1 output row, flattened (== OUT1)
    L3 = Wo2 * C2                        # one conv2 output row, flattened (== OUT2)
    OUT2 = L3

    B = batch_block or _pick_batch_block(N, Ho2)
    assert N % B == 0

    bf16 = jnp.bfloat16

    # input: pad H only (W padding is folded into the Toeplitz weights), fold 4 padded rows
    # into the lane dim, pre-cast to bf16 (halves the only streamed HBM->VMEM DMA).
    pad_bot = 4 * G1 - (H + 1)           # 1 real bottom pad row + alignment rows (never read)
    x_pad = jnp.pad(x_nhwc, ((0, 0), (1, pad_bot), (0, 0), (0, 0)))
    xf = x_pad.reshape(N, G1, 4 * L1).astype(bf16)

    # weights: Toeplitz in W (padding folded in), kh taps concatenated along K.
    w1t = _toeplitz_w(params["w_c1"], W, Wo1, 2, 1)            # (4, L1, L2)
    w1a = w1t.reshape(4 * L1, L2).astype(bf16)                 # even rows: taps 0..3
    w1b = w1t[0:2].reshape(2 * L1, L2).astype(bf16)            # odd rows: taps 0,1
    w1c = w1t[2:4].reshape(2 * L1, L2).astype(bf16)            # odd rows: taps 2,3
    b1t = jnp.tile(params["b_c1"], Wo1).reshape(1, L2)

    w2t = _toeplitz_w(params["w_c2"], Wo1, Wo2, 2, 1)          # (4, L2, OUT2)
    w2a = w2t[0:2].reshape(2 * L2, OUT2).astype(bf16)          # taps 0,1
    w2b = w2t[2:4].reshape(2 * L2, OUT2).astype(bf16)          # taps 2,3
    b2t = jnp.tile(params["b_c2"], Wo2).reshape(1, OUT2)

    w3t, b3t, wpt, bpt = [], [], [], []
    eye = jnp.eye(Wo2, dtype=jnp.float32)
    for key in ("res1", "res2"):
        p = params[key]
        w3t.append(_toeplitz_w(p["w3"], Wo2, Wo2, 1, 1))       # (3, L3, OUT2)
        b3t.append(jnp.tile(p["b3"], Wo2).reshape(1, OUT2))
        w1 = p["w1"].reshape(C2, C2)
        wpt.append(jnp.einsum("ab,io->aibo", eye, w1).reshape(OUT2, OUT2))  # block-diag 1x1
        bpt.append(jnp.tile(p["b1"], Wo2).reshape(1, OUT2))
    w3t = jnp.stack(w3t).astype(bf16)     # (2, 3, L3, OUT2)
    b3t = jnp.stack(b3t)                  # (2, 1, OUT2)
    wpt = jnp.stack(wpt).astype(bf16)     # (2, OUT2, OUT2)
    bpt = jnp.stack(bpt)                  # (2, 1, OUT2)

    # Toeplitz-in-W weights scale as O(W^2 * C); keep total residency well under VMEM.
    # TODO(synk): for large images add a Wo-tile grid axis instead of full-width weights.
    weight_bytes = sum(int(np.prod(a.shape)) * a.dtype.itemsize
                       for a in (w1a, w1b, w1c, w2a, w2b, w3t, wpt))
    assert weight_bytes < 24 * 1024 * 1024, (
        "Toeplitz weights too large for single-step VMEM residency; tile the output width")

    kernel = functools.partial(
        _encoder_kernel, B=B, U1=U1, L1=L1, L2=L2, HO2=Ho2, OUT2=OUT2, L3=L3)

    def _const(arr):
        nd = arr.ndim
        return pl.BlockSpec(arr.shape, lambda n, _nd=nd: (0,) * _nd)

    out = pl.pallas_call(
        kernel,
        out_shape=jax.ShapeDtypeStruct((N, Ho2, OUT2), jnp.float32),
        grid_spec=pltpu.PrefetchScalarGridSpec(
            num_scalar_prefetch=0,
            grid=(N // B,),
            in_specs=[
                pl.BlockSpec((B, G1, 4 * L1), lambda n: (n, 0, 0)),
                _const(w1a), _const(w1b), _const(w1c), _const(b1t),
                _const(w2a), _const(w2b), _const(b2t),
                _const(w3t), _const(b3t), _const(wpt), _const(bpt),
            ],
            out_specs=pl.BlockSpec((B, Ho2, OUT2), lambda n: (n, 0, 0)),
            scratch_shapes=[
                pltpu.VMEM((B, R2, 2 * L2), jnp.bfloat16),     # conv2 staged input (row-pair folded)
                pltpu.VMEM((B, Ho2 + 2, L3), jnp.bfloat16),    # residual 3x3 staged input
            ]),
        compiler_params=pltpu.CompilerParams(
            dimension_semantics=("parallel",)),
    )(xf, w1a, w1b, w1c, b1t, w2a, w2b, b2t, w3t, b3t, wpt, bpt)

    return out.reshape(N, Ho2, Wo2, C2)


# ------------------------------------------------------------------ reference --

def _ref_conv(x, w, b, stride, padding, dt):
    out = lax.conv_general_dilated(
        x.astype(dt), w.astype(dt), (stride, stride), [(padding, padding)] * 2,
        dimension_numbers=("NHWC", "HWIO", "NHWC"),
        preferred_element_type=jnp.float32)
    return out + b


def encoder_reference(x_nhwc, params, dt=jnp.float32):
    h = jnp.maximum(_ref_conv(x_nhwc, params["w_c1"], params["b_c1"], 2, 1, dt), 0.0)
    h = jnp.maximum(_ref_conv(h, params["w_c2"], params["b_c2"], 2, 1, dt), 0.0)
    for key in ("res1", "res2"):
        p = params[key]
        t = jnp.maximum(_ref_conv(jnp.maximum(h, 0.0), p["w3"], p["b3"], 1, 1, dt), 0.0)
        t = _ref_conv(t, p["w1"], p["b1"], 1, 0, dt)
        h = h + t
    return h


# ------------------------------------------------------------------ params --

def init_params(key, in_channels, num_hidden_units):
    half = num_hidden_units // 2
    ks = jax.random.split(key, 12)
    s = 0.05

    def w(k, shape):
        return jax.random.normal(k, shape, jnp.float32) * s

    def b(k, n):
        return jax.random.normal(k, (n,), jnp.float32) * s

    return {
        "w_c1": w(ks[0], (4, 4, in_channels, half)), "b_c1": b(ks[1], half),
        "w_c2": w(ks[2], (4, 4, half, num_hidden_units)), "b_c2": b(ks[3], num_hidden_units),
        "res1": {
            "w3": w(ks[4], (3, 3, num_hidden_units, num_hidden_units)), "b3": b(ks[5], num_hidden_units),
            "w1": w(ks[6], (1, 1, num_hidden_units, num_hidden_units)), "b1": b(ks[7], num_hidden_units),
        },
        "res2": {
            "w3": w(ks[8], (3, 3, num_hidden_units, num_hidden_units)), "b3": b(ks[9], num_hidden_units),
            "w1": w(ks[10], (1, 1, num_hidden_units, num_hidden_units)), "b1": b(ks[11], num_hidden_units),
        },
    }


# ------------------------------------------------------------------ main --

if __name__ == "__main__":
    # Small shapes consistent with Encoder(in_channels=4, num_hidden_units=32)
    N, C_IN, H, W = 2, 4, 16, 16
    HIDDEN = 32

    key = jax.random.PRNGKey(0)
    k_x, k_p = jax.random.split(key)
    params = init_params(k_p, C_IN, HIDDEN)

    x_nchw = jax.random.normal(k_x, (N, C_IN, H, W), jnp.float32)   # PyTorch layout
    x_nhwc = jnp.transpose(x_nchw, (0, 2, 3, 1))                    # kernel layout

    out_nhwc = jax.jit(encoder_forward)(x_nhwc, params)
    out_nhwc = jax.block_until_ready(out_nhwc)
    out_nchw = jnp.transpose(out_nhwc, (0, 3, 1, 2))                # back to PyTorch layout

    # sanity: (N, HIDDEN, H/4, W/4)
    assert out_nchw.shape == (N, HIDDEN, H // 4, W // 4), out_nchw.shape

    # strict check vs. a reference using the same bf16-input / f32-accumulate matmuls
    ref_bf16 = encoder_reference(x_nhwc, params, jnp.bfloat16)
    if not jnp.allclose(out_nhwc, ref_bf16, rtol=2e-3, atol=2e-3):
        raise AssertionError("Pallas encoder mismatch vs. bf16-matched JAX reference")

    # loose check vs. the full-f32 reference (bf16 matmul inputs add ~0.3%/layer rounding noise)
    ref_f32 = encoder_reference(x_nhwc, params, jnp.float32)
    if not jnp.allclose(out_nhwc, ref_f32, rtol=3e-2, atol=3e-2):
        raise AssertionError("Pallas encoder drifted too far from the f32 JAX reference")

    print("KERNEL_OK")
</pallas_src>

<mosaic_0001>
module attributes {stable_mosaic.version = 11 : i64} {
  func.func @_encoder_kernel(%arg0: i32, %arg1: memref<2x5x256xbf16, #tpu.memory_space<vmem>>, %arg2: memref<256x128xbf16, #tpu.memory_space<vmem>>, %arg3: memref<128x128xbf16, #tpu.memory_space<vmem>>, %arg4: memref<128x128xbf16, #tpu.memory_space<vmem>>, %arg5: memref<1x128xf32, #tpu.memory_space<vmem>>, %arg6: memref<256x128xbf16, #tpu.memory_space<vmem>>, %arg7: memref<256x128xbf16, #tpu.memory_space<vmem>>, %arg8: memref<1x128xf32, #tpu.memory_space<vmem>>, %arg9: memref<2x3x128x128xbf16, #tpu.memory_space<vmem>>, %arg10: memref<2x1x128xf32, #tpu.memory_space<vmem>>, %arg11: memref<2x128x128xbf16, #tpu.memory_space<vmem>>, %arg12: memref<2x1x128xf32, #tpu.memory_space<vmem>>, %arg13: memref<2x4x128xf32, #tpu.memory_space<vmem>>, %arg14: memref<2x5x256xbf16, #tpu.memory_space<vmem>>, %arg15: memref<2x6x128xbf16, #tpu.memory_space<vmem>>) attributes {dimension_semantics = [#tpu.dimension_semantics<parallel>], iteration_bounds = array<i64: 1>, scalar_prefetch = 0 : i64, scratch_operands = 2 : i64, tpu.core_type = #tpu.core_type<tc>, window_params = [{transform_indices = @transform_0, window_bounds = array<i64: 2, 5, 256>}, {pipeline_mode = #tpu.pipeline_mode<synchronous>, transform_indices = @transform_1, window_bounds = array<i64: 256, 128>}, {pipeline_mode = #tpu.pipeline_mode<synchronous>, transform_indices = @transform_2, window_bounds = array<i64: 128, 128>}, {pipeline_mode = #tpu.pipeline_mode<synchronous>, transform_indices = @transform_3, window_bounds = array<i64: 128, 128>}, {pipeline_mode = #tpu.pipeline_mode<synchronous>, transform_indices = @transform_4, window_bounds = array<i64: 1, 128>}, {pipeline_mode = #tpu.pipeline_mode<synchronous>, transform_indices = @transform_5, window_bounds = array<i64: 256, 128>}, {pipeline_mode = #tpu.pipeline_mode<synchronous>, transform_indices = @transform_6, window_bounds = array<i64: 256, 128>}, {pipeline_mode = #tpu.pipeline_mode<synchronous>, transform_indices = @transform_7, window_bounds = array<i64: 1, 128>}, {pipeline_mode = #tpu.pipeline_mode<synchronous>, transform_indices = @transform_8, window_bounds = array<i64: 2, 3, 128, 128>}, {pipeline_mode = #tpu.pipeline_mode<synchronous>, transform_indices = @transform_9, window_bounds = array<i64: 2, 1, 128>}, {pipeline_mode = #tpu.pipeline_mode<synchronous>, transform_indices = @transform_10, window_bounds = array<i64: 2, 128, 128>}, {pipeline_mode = #tpu.pipeline_mode<synchronous>, transform_indices = @transform_11, window_bounds = array<i64: 2, 1, 128>}, {transform_indices = @transform_12, window_bounds = array<i64: 2, 4, 128>}]} {
    %cst = arith.constant 0.000000e+00 : bf16
    %0 = vector.broadcast %cst : bf16 to vector<2x1x128xbf16>
    %c0 = arith.constant 0 : index
    %c0_0 = arith.constant 0 : index
    %c0_1 = arith.constant 0 : index
    %1 = vector.load %arg1[%c0, %c0_0, %c0_1] : memref<2x5x256xbf16, #tpu.memory_space<vmem>>, vector<2x4x256xbf16>
    %2 = vector.shape_cast %1 : vector<2x4x256xbf16> to vector<8x256xbf16>
    %c0_2 = arith.constant 0 : index
    %c0_3 = arith.constant 0 : index
    %3 = vector.load %arg2[%c0_2, %c0_3] : memref<256x128xbf16, #tpu.memory_space<vmem>>, vector<256x128xbf16>
    %cst_4 = arith.constant dense<0.000000e+00> : vector<8x128xf32>
    %4 = tpu.matmul %2, %3, %cst_4 {dimension_numbers = #tpu.dot_dimension_numbers<[1], [0], [0], [1], [0, 0, 1, 1], [], []>} : vector<8x256xbf16>, vector<256x128xbf16>, vector<8x128xf32> -> vector<8x128xf32>
    %c0_5 = arith.constant 0 : index
    %c0_6 = arith.constant 0 : index
    %5 = vector.load %arg5[%c0_5, %c0_6] : memref<1x128xf32, #tpu.memory_space<vmem>>, vector<1x128xf32>
    %6 = vector.broadcast %5 : vector<1x128xf32> to vector<8x128xf32>
    %7 = arith.addf %4, %6 : vector<8x128xf32>
    %cst_7 = arith.constant 0.000000e+00 : f32
    %8 = vector.broadcast %cst_7 : f32 to vector<8x128xf32>
    %9 = arith.maximumf %7, %8 : vector<8x128xf32>
    %10 = arith.truncf %9 : vector<8x128xf32> to vector<8x128xbf16>
    %11 = vector.shape_cast %10 : vector<8x128xbf16> to vector<2x4x128xbf16>
    %12 = tpu.concatenate %11, %0 in 1 : vector<2x4x128xbf16>, vector<2x1x128xbf16> -> vector<2x5x128xbf16>
    %c0_8 = arith.constant 0 : index
    %c0_9 = arith.constant 0 : index
    %c128 = arith.constant 128 : index
    %13 = vector.load %arg14[%c0_8, %c0_9, %c128] : memref<2x5x256xbf16, #tpu.memory_space<vmem>>, vector<2x5x128xbf16>
    tpu.vector_store %arg14[%c0_8, %c0_9, %c128], %12 {strides = array<i32>} : memref<2x5x256xbf16, #tpu.memory_space<vmem>>, vector<2x5x128xbf16>,
    %c0_10 = arith.constant 0 : index
    %c0_11 = arith.constant 0 : index
    %c128_12 = arith.constant 128 : index
    %14 = vector.load %arg1[%c0_10, %c0_11, %c128_12] : memref<2x5x256xbf16, #tpu.memory_space<vmem>>, vector<2x4x128xbf16>
    %15 = vector.shape_cast %14 : vector<2x4x128xbf16> to vector<8x128xbf16>
    %c0_13 = arith.constant 0 : index
    %c1 = arith.constant 1 : index
    %c0_14 = arith.constant 0 : index
    %16 = vector.load %arg1[%c0_13, %c1, %c0_14] : memref<2x5x256xbf16, #tpu.memory_space<vmem>>, vector<2x4x128xbf16>
    %17 = vector.shape_cast %16 : vector<2x4x128xbf16> to vector<8x128xbf16>
    %c0_15 = arith.constant 0 : index
    %c0_16 = arith.constant 0 : index
    %18 = vector.load %arg3[%c0_15, %c0_16] : memref<128x128xbf16, #tpu.memory_space<vmem>>, vector<128x128xbf16>
    %cst_17 = arith.constant dense<0.000000e+00> : vector<8x128xf32>
    %19 = tpu.matmul %15, %18, %cst_17 {dimension_numbers = #tpu.dot_dimension_numbers<[1], [0], [0], [1], [0, 0, 1, 1], [], []>} : vector<8x128xbf16>, vector<128x128xbf16>, vector<8x128xf32> -> vector<8x128xf32>
    %c0_18 = arith.constant 0 : index
    %c0_19 = arith.constant 0 : index
    %20 = vector.load %arg4[%c0_18, %c0_19] : memref<128x128xbf16, #tpu.memory_space<vmem>>, vector<128x128xbf16>
    %cst_20 = arith.constant dense<0.000000e+00> : vector<8x128xf32>
    %21 = tpu.matmul %17, %20, %cst_20 {dimension_numbers = #tpu.dot_dimension_numbers<[1], [0], [0], [1], [0, 0, 1, 1], [], []>} : vector<8x128xbf16>, vector<128x128xbf16>, vector<8x128xf32> -> vector<8x128xf32>
    %22 = arith.addf %19, %21 : vector<8x128xf32>
    %c0_21 = arith.constant 0 : index
    %c0_22 = arith.constant 0 : index
    %23 = vector.load %arg5[%c0_21, %c0_22] : memref<1x128xf32, #tpu.memory_space<vmem>>, vector<1x128xf32>
    %24 = vector.broadcast %23 : vector<1x128xf32> to vector<8x128xf32>
    %25 = arith.addf %22, %24 : vector<8x128xf32>
    %cst_23 = arith.constant 0.000000e+00 : f32
    %26 = vector.broadcast %cst_23 : f32 to vector<8x128xf32>
    %27 = arith.maximumf %25, %26 : vector<8x128xf32>
    %28 = arith.truncf %27 : vector<8x128xf32> to vector<8x128xbf16>
    %29 = vector.shape_cast %28 : vector<8x128xbf16> to vector<2x4x128xbf16>
    %30 = tpu.concatenate %0, %29 in 1 : vector<2x1x128xbf16>, vector<2x4x128xbf16> -> vector<2x5x128xbf16>
    %c0_24 = arith.constant 0 : index
    %c0_25 = arith.constant 0 : index
    %c0_26 = arith.constant 0 : index
    %31 = vector.load %arg14[%c0_24, %c0_25, %c0_26] : memref<2x5x256xbf16, #tpu.memory_space<vmem>>, vector<2x5x128xbf16>
    tpu.vector_store %arg14[%c0_24, %c0_25, %c0_26], %30 {strides = array<i32>} : memref<2x5x256xbf16, #tpu.memory_space<vmem>>, vector<2x5x128xbf16>,
    %c0_27 = arith.constant 0 : index
    %c0_28 = arith.constant 0 : index
    %c0_29 = arith.constant 0 : index
    %32 = vector.load %arg14[%c0_27, %c0_28, %c0_29] : memref<2x5x256xbf16, #tpu.memory_space<vmem>>, vector<2x4x256xbf16>
    %33 = vector.shape_cast %32 : vector<2x4x256xbf16> to vector<8x256xbf16>
    %c0_30 = arith.constant 0 : index
    %c1_31 = arith.constant 1 : index
    %c0_32 = arith.constant 0 : index
    %34 = vector.load %arg14[%c0_30, %c1_31, %c0_32] : memref<2x5x256xbf16, #tpu.memory_space<vmem>>, vector<2x4x256xbf16>
    %35 = vector.shape_cast %34 : vector<2x4x256xbf16> to vector<8x256xbf16>
    %c0_33 = arith.constant 0 : index
    %c0_34 = arith.constant 0 : index
    %36 = vector.load %arg6[%c0_33, %c0_34] : memref<256x128xbf16, #tpu.memory_space<vmem>>, vector<256x128xbf16>
    %cst_35 = arith.constant dense<0.000000e+00> : vector<8x128xf32>
    %37 = tpu.matmul %33, %36, %cst_35 {dimension_numbers = #tpu.dot_dimension_numbers<[1], [0], [0], [1], [0, 0, 1, 1], [], []>} : vector<8x256xbf16>, vector<256x128xbf16>, vector<8x128xf32> -> vector<8x128xf32>
    %c0_36 = arith.constant 0 : index
    %c0_37 = arith.constant 0 : index
    %38 = vector.load %arg7[%c0_36, %c0_37] : memref<256x128xbf16, #tpu.memory_space<vmem>>, vector<256x128xbf16>
    %cst_38 = arith.constant dense<0.000000e+00> : vector<8x128xf32>
    %39 = tpu.matmul %35, %38, %cst_38 {dimension_numbers = #tpu.dot_dimension_numbers<[1], [0], [0], [1], [0, 0, 1, 1], [], []>} : vector<8x256xbf16>, vector<256x128xbf16>, vector<8x128xf32> -> vector<8x128xf32>
    %40 = arith.addf %37, %39 : vector<8x128xf32>
    %c0_39 = arith.constant 0 : index
    %c0_40 = arith.constant 0 : index
    %41 = vector.load %arg8[%c0_39, %c0_40] : memref<1x128xf32, #tpu.memory_space<vmem>>, vector<1x128xf32>
    %42 = vector.broadcast %41 : vector<1x128xf32> to vector<8x128xf32>
    %43 = arith.addf %40, %42 : vector<8x128xf32>
    %cst_41 = arith.constant 0.000000e+00 : f32
    %44 = vector.broadcast %cst_41 : f32 to vector<8x128xf32>
    %45 = arith.maximumf %43, %44 : vector<8x128xf32>
    %cst_42 = arith.constant 0.000000e+00 : bf16
    %46 = vector.broadcast %cst_42 : bf16 to vector<2x1x128xbf16>
    %cst_43 = arith.constant 0.000000e+00 : f32
    %47 = vector.broadcast %cst_43 : f32 to vector<8x128xf32>
    %48 = arith.maximumf %45, %47 : vector<8x128xf32>
    %49 = arith.truncf %48 : vector<8x128xf32> to vector<8x128xbf16>
    %50 = vector.shape_cast %49 : vector<8x128xbf16> to vector<2x4x128xbf16>
    %51 = tpu.concatenate %46, %50, %46 in 1 : vector<2x1x128xbf16>, vector<2x4x128xbf16>, vector<2x1x128xbf16> -> vector<2x6x128xbf16>
    %c0_44 = arith.constant 0 : index
    %c0_45 = arith.constant 0 : index
    %c0_46 = arith.constant 0 : index
    %52 = vector.load %arg15[%c0_44, %c0_45, %c0_46] : memref<2x6x128xbf16, #tpu.memory_space<vmem>>, vector<2x6x128xbf16>
    tpu.vector_store %arg15[%c0_44, %c0_45, %c0_46], %51 {strides = array<i32>} : memref<2x6x128xbf16, #tpu.memory_space<vmem>>, vector<2x6x128xbf16>,
    %cst_47 = arith.constant 0.000000e+00 : f32
    %53 = vector.broadcast %cst_47 : f32 to vector<8x128xf32>
    %c0_48 = arith.constant 0 : index
    %c0_49 = arith.constant 0 : index
    %c0_50 = arith.constant 0 : index
    %54 = vector.load %arg15[%c0_48, %c0_49, %c0_50] : memref<2x6x128xbf16, #tpu.memory_space<vmem>>, vector<2x4x128xbf16>
    %55 = vector.shape_cast %54 : vector<2x4x128xbf16> to vector<8x128xbf16>
    %c0_51 = arith.constant 0 : index
    %c0_52 = arith.constant 0 : index
    %c0_53 = arith.constant 0 : index
    %c0_54 = arith.constant 0 : index
    %56 = vector.load %arg9[%c0_51, %c0_52, %c0_53, %c0_54] : memref<2x3x128x128xbf16, #tpu.memory_space<vmem>>, vector<1x1x128x128xbf16>
    %57 = vector.shape_cast %56 : vector<1x1x128x128xbf16> to vector<128x128xbf16>
    %cst_55 = arith.constant dense<0.000000e+00> : vector<8x128xf32>
    %58 = tpu.matmul %55, %57, %cst_55 {dimension_numbers = #tpu.dot_dimension_numbers<[1], [0], [0], [1], [0, 0, 1, 1], [], []>} : vector<8x128xbf16>, vector<128x128xbf16>, vector<8x128xf32> -> vector<8x128xf32>
    %59 = arith.addf %53, %58 : vector<8x128xf32>
    %c0_56 = arith.constant 0 : index
    %c1_57 = arith.constant 1 : index
    %c0_58 = arith.constant 0 : index
    %60 = vector.load %arg15[%c0_56, %c1_57, %c0_58] : memref<2x6x128xbf16, #tpu.memory_space<vmem>>, vector<2x4x128xbf16>
    %61 = vector.shape_cast %60 : vector<2x4x128xbf16> to vector<8x128xbf16>
    %c0_59 = arith.constant 0 : index
    %c1_60 = arith.constant 1 : index
    %c0_61 = arith.constant 0 : index
    %c0_62 = arith.constant 0 : index
    %62 = vector.load %arg9[%c0_59, %c1_60, %c0_61, %c0_62] : memref<2x3x128x128xbf16, #tpu.memory_space<vmem>>, vector<1x1x128x128xbf16>
    %63 = vector.shape_cast %62 : vector<1x1x128x128xbf16> to vector<128x128xbf16>
    %cst_63 = arith.constant dense<0.000000e+00> : vector<8x128xf32>
    %64 = tpu.matmul %61, %63, %cst_63 {dimension_numbers = #tpu.dot_dimension_numbers<[1], [0], [0], [1], [0, 0, 1, 1], [], []>} : vector<8x128xbf16>, vector<128x128xbf16>, vector<8x128xf32> -> vector<8x128xf32>
    %65 = arith.addf %59, %64 : vector<8x128xf32>
    %c0_64 = arith.constant 0 : index
    %c2 = arith.constant 2 : index
    %c0_65 = arith.constant 0 : index
    %66 = vector.load %arg15[%c0_64, %c2, %c0_65] : memref<2x6x128xbf16, #tpu.memory_space<vmem>>, vector<2x4x128xbf16>
    %67 = vector.shape_cast %66 : vector<2x4x128xbf16> to vector<8x128xbf16>
    %c0_66 = arith.constant 0 : index
    %c2_67 = arith.constant 2 : index
    %c0_68 = arith.constant 0 : index
    %c0_69 = arith.constant 0 : index
    %68 = vector.load %arg9[%c0_66, %c2_67, %c0_68, %c0_69] : memref<2x3x128x128xbf16, #tpu.memory_space<vmem>>, vector<1x1x128x128xbf16>
    %69 = vector.shape_cast %68 : vector<1x1x128x128xbf16> to vector<128x128xbf16>
    %cst_70 = arith.constant dense<0.000000e+00> : vector<8x128xf32>
    %70 = tpu.matmul %67, %69, %cst_70 {dimension_numbers = #tpu.dot_dimension_numbers<[1], [0], [0], [1], [0, 0, 1, 1], [], []>} : vector<8x128xbf16>, vector<128x128xbf16>, vector<8x128xf32> -> vector<8x128xf32>
    %71 = arith.addf %65, %70 : vector<8x128xf32>
    %c0_71 = arith.constant 0 : index
    %c0_72 = arith.constant 0 : index
    %c0_73 = arith.constant 0 : index
    %72 = vector.load %arg10[%c0_71, %c0_72, %c0_73] : memref<2x1x128xf32, #tpu.memory_space<vmem>>, vector<1x1x128xf32>
    %73 = vector.shape_cast %72 : vector<1x1x128xf32> to vector<1x128xf32>
    %74 = vector.broadcast %73 : vector<1x128xf32> to vector<8x128xf32>
    %75 = arith.addf %71, %74 : vector<8x128xf32>
    %cst_74 = arith.constant 0.000000e+00 : f32
    %76 = vector.broadcast %cst_74 : f32 to vector<8x128xf32>
    %77 = arith.maximumf %75, %76 : vector<8x128xf32>
    %78 = arith.truncf %77 : vector<8x128xf32> to vector<8x128xbf16>
    %c0_75 = arith.constant 0 : index
    %c0_76 = arith.constant 0 : index
    %c0_77 = arith.constant 0 : index
    %79 = vector.load %arg11[%c0_75, %c0_76, %c0_77] : memref<2x128x128xbf16, #tpu.memory_space<vmem>>, vector<1x128x128xbf16>
    %80 = vector.shape_cast %79 : vector<1x128x128xbf16> to vector<128x128xbf16>
    %cst_78 = arith.constant dense<0.000000e+00> : vector<8x128xf32>
    %81 = tpu.matmul %78, %80, %cst_78 {dimension_numbers = #tpu.dot_dimension_numbers<[1], [0], [0], [1], [0, 0, 1, 1], [], []>} : vector<8x128xbf16>, vector<128x128xbf16>, vector<8x128xf32> -> vector<8x128xf32>
    %82 = arith.addf %45, %81 : vector<8x128xf32>
    %c0_79 = arith.constant 0 : index
    %c0_80 = arith.constant 0 : index
    %c0_81 = arith.constant 0 : index
    %83 = vector.load %arg12[%c0_79, %c0_80, %c0_81] : memref<2x1x128xf32, #tpu.memory_space<vmem>>, vector<1x1x128xf32>
    %84 = vector.shape_cast %83 : vector<1x1x128xf32> to vector<1x128xf32>
    %85 = vector.broadcast %84 : vector<1x128xf32> to vector<8x128xf32>
    %86 = arith.addf %82, %85 : vector<8x128xf32>
    %cst_82 = arith.constant 0.000000e+00 : f32
    %87 = vector.broadcast %cst_82 : f32 to vector<8x128xf32>
    %88 = arith.maximumf %86, %87 : vector<8x128xf32>
    %89 = arith.truncf %88 : vector<8x128xf32> to vector<8x128xbf16>
    %90 = vector.shape_cast %89 : vector<8x128xbf16> to vector<2x4x128xbf16>
    %91 = tpu.concatenate %46, %90, %46 in 1 : vector<2x1x128xbf16>, vector<2x4x128xbf16>, vector<2x1x128xbf16> -> vector<2x6x128xbf16>
    %c0_83 = arith.constant 0 : index
    %c0_84 = arith.constant 0 : index
    %c0_85 = arith.constant 0 : index
    %92 = vector.load %arg15[%c0_83, %c0_84, %c0_85] : memref<2x6x128xbf16, #tpu.memory_space<vmem>>, vector<2x6x128xbf16>
    tpu.vector_store %arg15[%c0_83, %c0_84, %c0_85], %91 {strides = array<i32>} : memref<2x6x128xbf16, #tpu.memory_space<vmem>>, vector<2x6x128xbf16>,
    %cst_86 = arith.constant 0.000000e+00 : f32
    %93 = vector.broadcast %cst_86 : f32 to vector<8x128xf32>
    %c0_87 = arith.constant 0 : index
    %c0_88 = arith.constant 0 : index
    %c0_89 = arith.constant 0 : index
    %94 = vector.load %arg15[%c0_87, %c0_88, %c0_89] : memref<2x6x128xbf16, #tpu.memory_space<vmem>>, vector<2x4x128xbf16>
    %95 = vector.shape_cast %94 : vector<2x4x128xbf16> to vector<8x128xbf16>
    %c1_90 = arith.constant 1 : index
    %c0_91 = arith.constant 0 : index
    %c0_92 = arith.constant 0 : index
    %c0_93 = arith.constant 0 : index
    %96 = vector.load %arg9[%c1_90, %c0_91, %c0_92, %c0_93] : memref<2x3x128x128xbf16, #tpu.memory_space<vmem>>, vector<1x1x128x128xbf16>
    %97 = vector.shape_cast %96 : vector<1x1x128x128xbf16> to vector<128x128xbf16>
    %cst_94 = arith.constant dense<0.000000e+00> : vector<8x128xf32>
    %98 = tpu.matmul %95, %97, %cst_94 {dimension_numbers = #tpu.dot_dimension_numbers<[1], [0], [0], [1], [0, 0, 1, 1], [], []>} : vector<8x128xbf16>, vector<128x128xbf16>, vector<8x128xf32> -> vector<8x128xf32>
    %99 = arith.addf %93, %98 : vector<8x128xf32>
    %c0_95 = arith.constant 0 : index
    %c1_96 = arith.constant 1 : index
    %c0_97 = arith.constant 0 : index
    %100 = vector.load %arg15[%c0_95, %c1_96, %c0_97] : memref<2x6x128xbf16, #tpu.memory_space<vmem>>, vector<2x4x128xbf16>
    %101 = vector.shape_cast %100 : vector<2x4x128xbf16> to vector<8x128xbf16>
    %c1_98 = arith.constant 1 : index
    %c1_99 = arith.constant 1 : index
    %c0_100 = arith.constant 0 : index
    %c0_101 = arith.constant 0 : index
    %102 = vector.load %arg9[%c1_98, %c1_99, %c0_100, %c0_101] : memref<2x3x128x128xbf16, #tpu.memory_space<vmem>>, vector<1x1x128x128xbf16>
    %103 = vector.shape_cast %102 : vector<1x1x128x128xbf16> to vector<128x128xbf16>
    %cst_102 = arith.constant dense<0.000000e+00> : vector<8x128xf32>
    %104 = tpu.matmul %101, %103, %cst_102 {dimension_numbers = #tpu.dot_dimension_numbers<[1], [0], [0], [1], [0, 0, 1, 1], [], []>} : vector<8x128xbf16>, vector<128x128xbf16>, vector<8x128xf32> -> vector<8x128xf32>
    %105 = arith.addf %99, %104 : vector<8x128xf32>
    %c0_103 = arith.constant 0 : index
    %c2_104 = arith.constant 2 : index
    %c0_105 = arith.constant 0 : index
    %106 = vector.load %arg15[%c0_103, %c2_104, %c0_105] : memref<2x6x128xbf16, #tpu.memory_space<vmem>>, vector<2x4x128xbf16>
    %107 = vector.shape_cast %106 : vector<2x4x128xbf16> to vector<8x128xbf16>
    %c1_106 = arith.constant 1 : index
    %c2_107 = arith.constant 2 : index
    %c0_108 = arith.constant 0 : index
    %c0_109 = arith.constant 0 : index
    %108 = vector.load %arg9[%c1_106, %c2_107, %c0_108, %c0_109] : memref<2x3x128x128xbf16, #tpu.memory_space<vmem>>, vector<1x1x128x128xbf16>
    %109 = vector.shape_cast %108 : vector<1x1x128x128xbf16> to vector<128x128xbf16>
    %cst_110 = arith.constant dense<0.000000e+00> : vector<8x128xf32>
    %110 = tpu.matmul %107, %109, %cst_110 {dimension_numbers = #tpu.dot_dimension_numbers<[1], [0], [0], [1], [0, 0, 1, 1], [], []>} : vector<8x128xbf16>, vector<128x128xbf16>, vector<8x128xf32> -> vector<8x128xf32>
    %111 = arith.addf %105, %110 : vector<8x128xf32>
    %c1_111 = arith.constant 1 : index
    %c0_112 = arith.constant 0 : index
    %c0_113 = arith.constant 0 : index
    %112 = vector.load %arg10[%c1_111, %c0_112, %c0_113] : memref<2x1x128xf32, #tpu.memory_space<vmem>>, vector<1x1x128xf32>
    %113 = vector.shape_cast %112 : vector<1x1x128xf32> to vector<1x128xf32>
    %114 = vector.broadcast %113 : vector<1x128xf32> to vector<8x128xf32>
    %115 = arith.addf %111, %114 : vector<8x128xf32>
    %cst_114 = arith.constant 0.000000e+00 : f32
    %116 = vector.broadcast %cst_114 : f32 to vector<8x128xf32>
    %117 = arith.maximumf %115, %116 : vector<8x128xf32>
    %118 = arith.truncf %117 : vector<8x128xf32> to vector<8x128xbf16>
    %c1_115 = arith.constant 1 : index
    %c0_116 = arith.constant 0 : index
    %c0_117 = arith.constant 0 : index
    %119 = vector.load %arg11[%c1_115, %c0_116, %c0_117] : memref<2x128x128xbf16, #tpu.memory_space<vmem>>, vector<1x128x128xbf16>
    %120 = vector.shape_cast %119 : vector<1x128x128xbf16> to vector<128x128xbf16>
    %cst_118 = arith.constant dense<0.000000e+00> : vector<8x128xf32>
    %121 = tpu.matmul %118, %120, %cst_118 {dimension_numbers = #tpu.dot_dimension_numbers<[1], [0], [0], [1], [0, 0, 1, 1], [], []>} : vector<8x128xbf16>, vector<128x128xbf16>, vector<8x128xf32> -> vector<8x128xf32>
    %122 = arith.addf %86, %121 : vector<8x128xf32>
    %c1_119 = arith.constant 1 : index
    %c0_120 = arith.constant 0 : index
    %c0_121 = arith.constant 0 : index
    %123 = vector.load %arg12[%c1_119, %c0_120, %c0_121] : memref<2x1x128xf32, #tpu.memory_space<vmem>>, vector<1x1x128xf32>
    %124 = vector.shape_cast %123 : vector<1x1x128xf32> to vector<1x128xf32>
    %125 = vector.broadcast %124 : vector<1x128xf32> to vector<8x128xf32>
    %126 = arith.addf %122, %125 : vector<8x128xf32>
    %127 = vector.shape_cast %126 : vector<8x128xf32> to vector<2x4x128xf32>
    %c0_122 = arith.constant 0 : index
    %c0_123 = arith.constant 0 : index
    %c0_124 = arith.constant 0 : index
    %128 = vector.load %arg13[%c0_122, %c0_123, %c0_124] : memref<2x4x128xf32, #tpu.memory_space<vmem>>, vector<2x4x128xf32>
    tpu.vector_store %arg13[%c0_122, %c0_123, %c0_124], %127 {strides = array<i32>} : memref<2x4x128xf32, #tpu.memory_space<vmem>>, vector<2x4x128xf32>,
    return
  }
  func.func @transform_0(%arg0: i32) -> (i32, i32, i32) {
    %c0_i32 = arith.constant 0 : i32
    %c0_i32_0 = arith.constant 0 : i32
    %c0_i32_1 = arith.constant 0 : i32
    return %arg0, %c0_i32, %c0_i32_0 : i32, i32, i32
  }
  func.func @transform_1(%arg0: i32) -> (i32, i32) {
    %c0_i32 = arith.constant 0 : i32
    %c0_i32_0 = arith.constant 0 : i32
    %c0_i32_1 = arith.constant 0 : i32
    return %c0_i32, %c0_i32_0 : i32, i32
  }
  func.func @transform_2(%arg0: i32) -> (i32, i32) {
    %c0_i32 = arith.constant 0 : i32
    %c0_i32_0 = arith.constant 0 : i32
    %c0_i32_1 = arith.constant 0 : i32
    return %c0_i32, %c0_i32_0 : i32, i32
  }
  func.func @transform_3(%arg0: i32) -> (i32, i32) {
    %c0_i32 = arith.constant 0 : i32
    %c0_i32_0 = arith.constant 0 : i32
    %c0_i32_1 = arith.constant 0 : i32
    return %c0_i32, %c0_i32_0 : i32, i32
  }
  func.func @transform_4(%arg0: i32) -> (i32, i32) {
    %c0_i32 = arith.constant 0 : i32
    %c0_i32_0 = arith.constant 0 : i32
    %c0_i32_1 = arith.constant 0 : i32
    return %c0_i32, %c0_i32_0 : i32, i32
  }
  func.func @transform_5(%arg0: i32) -> (i32, i32) {
    %c0_i32 = arith.constant 0 : i32
    %c0_i32_0 = arith.constant 0 : i32
    %c0_i32_1 = arith.constant 0 : i32
    return %c0_i32, %c0_i32_0 : i32, i32
  }
  func.func @transform_6(%arg0: i32) -> (i32, i32) {
    %c0_i32 = arith.constant 0 : i32
    %c0_i32_0 = arith.constant 0 : i32
    %c0_i32_1 = arith.constant 0 : i32
    return %c0_i32, %c0_i32_0 : i32, i32
  }
  func.func @transform_7(%arg0: i32) -> (i32, i32) {
    %c0_i32 = arith.constant 0 : i32
    %c0_i32_0 = arith.constant 0 : i32
    %c0_i32_1 = arith.constant 0 : i32
    return %c0_i32, %c0_i32_0 : i32, i32
  }
  func.func @transform_8(%arg0: i32) -> (i32, i32, i32, i32) {
    %c0_i32 = arith.constant 0 : i32
    %c0_i32_0 = arith.constant 0 : i32
    %c0_i32_1 = arith.constant 0 : i32
    %c0_i32_2 = arith.constant 0 : i32
    %c0_i32_3 = arith.constant 0 : i32
    return %c0_i32, %c0_i32_0, %c0_i32_1, %c0_i32_2 : i32, i32, i32, i32
  }
  func.func @transform_9(%arg0: i32) -> (i32, i32, i32) {
    %c0_i32 = arith.constant 0 : i32
    %c0_i32_0 = arith.constant 0 : i32
    %c0_i32_1 = arith.constant 0 : i32
    %c0_i32_2 = arith.constant 0 : i32
    return %c0_i32, %c0_i32_0, %c0_i32_1 : i32, i32, i32
  }
  func.func @transform_10(%arg0: i32) -> (i32, i32, i32) {
    %c0_i32 = arith.constant 0 : i32
    %c0_i32_0 = arith.constant 0 : i32
    %c0_i32_1 = arith.constant 0 : i32
    %c0_i32_2 = arith.constant 0 : i32
    return %c0_i32, %c0_i32_0, %c0_i32_1 : i32, i32, i32
  }
  func.func @transform_11(%arg0: i32) -> (i32, i32, i32) {
    %c0_i32 = arith.constant 0 : i32
    %c0_i32_0 = arith.constant 0 : i32
    %c0_i32_1 = arith.constant 0 : i32
    %c0_i32_2 = arith.constant 0 : i32
    return %c0_i32, %c0_i32_0, %c0_i32_1 : i32, i32, i32
  }
  func.func @transform_12(%arg0: i32) -> (i32, i32, i32) {
    %c0_i32 = arith.constant 0 : i32
    %c0_i32_0 = arith.constant 0 : i32
    %c0_i32_1 = arith.constant 0 : i32
    return %arg0, %c0_i32, %c0_i32_0 : i32, i32, i32
  }
}

</mosaic_0001>

<llo_original>
// kernel: tile.33
$region0: #{tile.33}
  #allocation0 [shape = 's32[1]{0}', space=sflag, size = 0x4, scoped, tag = 'scoped memory for tile.33']
  %s0 = inlined_call_operand.vmem [shape: f32[16], index: 0, kind: input, shape index: {}]
  %s1 = inlined_call_operand.vmem [shape: f32[8,16], index: 1, kind: output, shape index: {}]
  // Predicated region
  $region2: #{tile.33} parent=0 // pred_check
    _
  $region3: #{tile.33} parent=0 // pred_check_branch
    %3 = sbr.rel (0) target = $region5
  $region4: #{tile.33} parent=0 // pred_region
    _
  $region5: #{tile.33} parent=0 // pred_fallthru
    _
  %v4 = vld [vmem:[%s0] ss:$0 sm:$0xff]
  %5 = vst [vmem:[%s1] sm:$0xff] %v4

// kernel: tile.34
$region0: #{tile.34}
  %s0 = inlined_call_operand.vmem [shape: f32[8,16], index: 0, kind: input, shape index: {}]
  %s1 = inlined_call_operand.vmem [shape: f32[1,128], index: 1, kind: output, shape index: {}]
  $region1: #{tile.34} parent=0
    #allocation0 [shape = 'u8[4096]{0}', space=vmem, size = 0x1000, scoped, tag = 'scoped mem for output reshape']
    %v2 = vld [vmem:[%s0] sm:$0x1]
    %vm3 = vcmask 130048
    %4 = vst.msk [vmem:[#allocation0] sm:$0x1] %vm3, %v2
    %s5 = scalar_lea.vmem %s0, 7
    %v6 = vld [vmem:[%s5] sm:$0x1]
    %7 = vrot.lane.b32.xlu0 %v6, 112
    %v8 = vpop.permute.xlu0 %7
    %vm9 = vcmask 1048448
    %10 = vst.msk [vmem:[#allocation0] sm:$0x1] %vm9, %v8
    %s11 = scalar_lea.vmem %s0, 6
    %v12 = vld [vmem:[%s11] sm:$0x1]
    %13 = vrot.lane.b32.xlu0 %v12, 96
    %v14 = vpop.permute.xlu0 %13
    %vm15 = vcmask 917248
    %16 = vst.msk [vmem:[#allocation0] sm:$0x1] %vm15, %v14
    %s17 = scalar_lea.vmem %s0, 5
    %v18 = vld [vmem:[%s17] sm:$0x1]
    %19 = vrot.lane.b32.xlu0 %v18, 80
    %v20 = vpop.permute.xlu0 %19
    %vm21 = vcmask 786048
    %22 = vst.msk [vmem:[#allocation0] sm:$0x1] %vm21, %v20
    %s23 = scalar_lea.vmem %s0, 4
    %v24 = vld [vmem:[%s23] sm:$0x1]
    %25 = vrot.lane.b32.xlu0 %v24, 64
    %v26 = vpop.permute.xlu0 %25
    %vm27 = vcmask 654848
    %28 = vst.msk [vmem:[#allocation0] sm:$0x1] %vm27, %v26
    %s29 = scalar_lea.vmem %s0, 3
    %v30 = vld [vmem:[%s29] sm:$0x1]
    %31 = vrot.lane.b32.xlu0 %v30, 48
    %v32 = vpop.permute.xlu0 %31
    %vm33 = vcmask 523648
    %34 = vst.msk [vmem:[#allocation0] sm:$0x1] %vm33, %v32
    %s35 = scalar_lea.vmem %s0, 2
    %v36 = vld [vmem:[%s35] sm:$0x1]
    %37 = vrot.lane.b32.xlu0 %v36, 32
    %v38 = vpop.permute.xlu0 %37
    %vm39 = vcmask 392448
    %40 = vst.msk [vmem:[#allocation0] sm:$0x1] %vm39, %v38
    %s41 = scalar_lea.vmem %s0, 1
    %v42 = vld [vmem:[%s41] sm:$0x1]
    %43 = vrot.lane.b32.xlu0 %v42, 16
    %v44 = vpop.permute.xlu0 %43
    %vm45 = vcmask 261248
    %46 = vst.msk [vmem:[#allocation0] sm:$0x1] %vm45, %v44
    %s48 = ssub.s32 2, 1
    %v49 = vld [vmem:[#allocation0] sm:%s48]
    %s51 = ssub.s32 2, 1
    %52 = vst [vmem:[%s1] sm:%s51] %v49

// kernel: tile.38
$region0: #{tile.38}
  #allocation0 [shape = 's32[1]{0}', space=sflag, size = 0x4, scoped, tag = 'scoped memory for tile.38']
  %s0 = inlined_call_operand.vmem [shape: f32[32], index: 0, kind: input, shape index: {}]
  %s1 = inlined_call_operand.vmem [shape: f32[4,32], index: 1, kind: output, shape index: {}]
  // Predicated region
  $region2: #{tile.38} parent=0 // pred_check
    _
  $region3: #{tile.38} parent=0 // pred_check_branch
    %3 = sbr.rel (0) target = $region5
  $region4: #{tile.38} parent=0 // pred_region
    _
  $region5: #{tile.38} parent=0 // pred_fallthru
    _
  %v4 = vld [vmem:[%s0] ss:$0 sm:$0xff]
  %5 = vst [vmem:[%s1] sm:$0xf] %v4

// kernel: tile.39
$region0: #{tile.39}
  %s0 = inlined_call_operand.vmem [shape: f32[4,32], index: 0, kind: input, shape index: {}]
  %s1 = inlined_call_operand.vmem [shape: f32[1,128], index: 1, kind: output, shape index: {}]
  $region1: #{tile.39} parent=0
    #allocation0 [shape = 'u8[4096]{0}', space=vmem, size = 0x1000, scoped, tag = 'scoped mem for output reshape']
    #allocation1 [shape = 'u8[4096]{0}', space=vmem, size = 0x1000, scoped, tag = 'scoped mem for input reshape']
    %s3 = ssub.s32 16, 1
    %v4 = vld [vmem:[%s0] sm:%s3]
    %5 = vst [vmem:[#allocation1] sm:%s3] %v4
    %v6 = vld [vmem:[#allocation1] sm:$0x1]
    %vm7 = vcmask 261120
    %8 = vst.msk [vmem:[#allocation0] sm:$0x1] %vm7, %v6
    %s9 = scalar_lea.vmem [#allocation1], 3
    %v10 = vld [vmem:[%s9] sm:$0x1]
    %11 = vrot.lane.b32.xlu0 %v10, 96
    %v12 = vpop.permute.xlu0 %11
    %vm13 = vcmask 1048320
    %14 = vst.msk [vmem:[#allocation0] sm:$0x1] %vm13, %v12
    %s15 = scalar_lea.vmem [#allocation1], 2
    %v16 = vld [vmem:[%s15] sm:$0x1]
    %17 = vrot.lane.b32.xlu0 %v16, 64
    %v18 = vpop.permute.xlu0 %17
    %vm19 = vcmask 785920
    %20 = vst.msk [vmem:[#allocation0] sm:$0x1] %vm19, %v18
    %s21 = scalar_lea.vmem [#allocation1], 1
    %v22 = vld [vmem:[%s21] sm:$0x1]
    %23 = vrot.lane.b32.xlu0 %v22, 32
    %v24 = vpop.permute.xlu0 %23
    %vm25 = vcmask 523520
    %26 = vst.msk [vmem:[#allocation0] sm:$0x1] %vm25, %v24
    %s28 = ssub.s32 2, 1
    %v29 = vld [vmem:[#allocation0] sm:%s28]
    %s31 = ssub.s32 2, 1
    %32 = vst [vmem:[%s1] sm:%s31] %v29

// kernel: tile.57
$region0: #{tile.57}
  %s0 = inlined_call_operand.vmem [shape: f32[4,32], index: 0, kind: input, shape index: {}]
  %s1 = inlined_call_operand.vmem [shape: f32[1,1,128], index: 1, kind: output, shape index: {}]
  $region1: #{tile.57} parent=0
    #allocation0 [shape = 'u8[4096]{0}', space=vmem, size = 0x1000, scoped, tag = 'scoped mem for output reshape']
    #allocation1 [shape = 'u8[4096]{0}', space=vmem, size = 0x1000, scoped, tag = 'scoped mem for input reshape']
    %s3 = ssub.s32 16, 1
    %v4 = vld [vmem:[%s0] sm:%s3]
    %5 = vst [vmem:[#allocation1] sm:%s3] %v4
    %v6 = vld [vmem:[#allocation1] sm:$0x1]
    %vm7 = vcmask 261120
    %8 = vst.msk [vmem:[#allocation0] sm:$0x1] %vm7, %v6
    %s9 = scalar_lea.vmem [#allocation1], 3
    %v10 = vld [vmem:[%s9] sm:$0x1]
    %11 = vrot.lane.b32.xlu0 %v10, 96
    %v12 = vpop.permute.xlu0 %11
    %vm13 = vcmask 1048320
    %14 = vst.msk [vmem:[#allocation0] sm:$0x1] %vm13, %v12
    %s15 = scalar_lea.vmem [#allocation1], 2
    %v16 = vld [vmem:[%s15] sm:$0x1]
    %17 = vrot.lane.b32.xlu0 %v16, 64
    %v18 = vpop.permute.xlu0 %17
    %vm19 = vcmask 785920
    %20 = vst.msk [vmem:[#allocation0] sm:$0x1] %vm19, %v18
    %s21 = scalar_lea.vmem [#allocation1], 1
    %v22 = vld [vmem:[%s21] sm:$0x1]
    %23 = vrot.lane.b32.xlu0 %v22, 32
    %v24 = vpop.permute.xlu0 %23
    %vm25 = vcmask 523520
    %26 = vst.msk [vmem:[#allocation0] sm:$0x1] %vm25, %v24
    %s28 = ssub.s32 2, 1
    %v29 = vld [vmem:[#allocation0] sm:%s28]
    %s31 = ssub.s32 2, 1
    %32 = vst [vmem:[%s1] sm:%s31] %v29

// kernel: encoder_forward.1
$region0: #{encoder_forward.1}
  #allocation0 [shape = 'u32[]', space=smem, size = 0x4, offset = 0x4, fixed_abs, tag = 'smem constant byte address 0x4 - core index']
  #allocation1 [shape = 'u32[72,128]{1,0:T(1,128)}', space=vmem, size = 0x9000, scoped, tag = 'internal scratch']
  #allocation2 [shape = 'bf16[2,5,256]{2,1,0:T(8,128)(2,1)}', space=vmem, size = 0x2000, scoped, tag = 'scratch operand']
  #allocation3 [shape = 'bf16[2,6,128]{2,1,0:T(8,128)(2,1)}', space=vmem, size = 0x1000, scoped, tag = 'scratch operand']
  %s0 = inlined_call_operand.vmem [shape: bf16[2,5,256], index: 0, kind: input, shape index: {}]
  %s1 = inlined_call_operand.vmem [shape: bf16[256,128], index: 1, kind: input, shape index: {}]
  %s2 = inlined_call_operand.vmem [shape: bf16[128,128], index: 2, kind: input, shape index: {}]
  %s3 = inlined_call_operand.vmem [shape: bf16[128,128], index: 3, kind: input, shape index: {}]
  %s4 = inlined_call_operand.vmem [shape: f32[1,128], index: 4, kind: input, shape index: {}]
  %s5 = inlined_call_operand.vmem [shape: bf16[256,128], index: 5, kind: input, shape index: {}]
  %s6 = inlined_call_operand.vmem [shape: bf16[256,128], index: 6, kind: input, shape index: {}]
  %s7 = inlined_call_operand.vmem [shape: f32[1,128], index: 7, kind: input, shape index: {}]
  %s8 = inlined_call_operand.vmem [shape: bf16[2,3,128,128], index: 8, kind: input, shape index: {}]
  %s9 = inlined_call_operand.vmem [shape: f32[2,1,128], index: 9, kind: input, shape index: {}]
  %s10 = inlined_call_operand.vmem [shape: bf16[2,128,128], index: 10, kind: input, shape index: {}]
  %s11 = inlined_call_operand.vmem [shape: f32[2,1,128], index: 11, kind: input, shape index: {}]
  %s12 = inlined_call_operand.vmem [shape: f32[2,4,128], index: 12, kind: output, shape index: {}]
  %s13 = sld [smem:[#allocation0]]
  $region58: #{encoder_forward.1} parent=0
    _
  %s15 = ssub.s32 1, %s13
  %s16 = scalar_select 0, %s15, %s13
  // Predicated region
  $region2: #{encoder_forward.1} parent=0 // pred_check
    _
  $region3: #{encoder_forward.1} parent=0 // pred_check_branch
    %18 = sbr.rel (0) target = $region5
  $region4: #{encoder_forward.1} parent=0 // pred_region
    _
  $region5: #{encoder_forward.1} parent=0 // pred_fallthru
    _
  // Predicated region
  $region6: #{encoder_forward.1} parent=0 // pred_check
    _
  $region7: #{encoder_forward.1} parent=0 // pred_check_branch
    %20 = sbr.rel (0) target = $region9
  $region8: #{encoder_forward.1} parent=0 // pred_region
    _
  $region9: #{encoder_forward.1} parent=0 // pred_fallthru
    _
  // Predicated region
  $region10: #{encoder_forward.1} parent=0 // pred_check
    _
  $region11: #{encoder_forward.1} parent=0 // pred_check_branch
    %22 = sbr.rel (0) target = $region13
  $region12: #{encoder_forward.1} parent=0 // pred_region
    _
  $region13: #{encoder_forward.1} parent=0 // pred_fallthru
    _
  // Predicated region
  $region14: #{encoder_forward.1} parent=0 // pred_check
    _
  $region15: #{encoder_forward.1} parent=0 // pred_check_branch
    %24 = sbr.rel (0) target = $region17
  $region16: #{encoder_forward.1} parent=0 // pred_region
    _
  $region17: #{encoder_forward.1} parent=0 // pred_fallthru
    _
  // Predicated region
  $region18: #{encoder_forward.1} parent=0 // pred_check
    _
  $region19: #{encoder_forward.1} parent=0 // pred_check_branch
    %26 = sbr.rel (0) target = $region21
  $region20: #{encoder_forward.1} parent=0 // pred_region
    _
  $region21: #{encoder_forward.1} parent=0 // pred_fallthru
    _
  // Predicated region
  $region22: #{encoder_forward.1} parent=0 // pred_check
    _
  $region23: #{encoder_forward.1} parent=0 // pred_check_branch
    %28 = sbr.rel (0) target = $region25
  $region24: #{encoder_forward.1} parent=0 // pred_region
    _
  $region25: #{encoder_forward.1} parent=0 // pred_fallthru
    _
  // Predicated region
  $region26: #{encoder_forward.1} parent=0 // pred_check
    _
  $region27: #{encoder_forward.1} parent=0 // pred_check_branch
    %30 = sbr.rel (0) target = $region29
  $region28: #{encoder_forward.1} parent=0 // pred_region
    _
  $region29: #{encoder_forward.1} parent=0 // pred_fallthru
    _
  // Predicated region
  $region30: #{encoder_forward.1} parent=0 // pred_check
    _
  $region31: #{encoder_forward.1} parent=0 // pred_check_branch
    %32 = sbr.rel (0) target = $region33
  $region32: #{encoder_forward.1} parent=0 // pred_region
    _
  $region33: #{encoder_forward.1} parent=0 // pred_fallthru
    _
  // Predicated region
  $region34: #{encoder_forward.1} parent=0 // pred_check
    _
  $region35: #{encoder_forward.1} parent=0 // pred_check_branch
    %34 = sbr.rel (0) target = $region37
  $region36: #{encoder_forward.1} parent=0 // pred_region
    _
  $region37: #{encoder_forward.1} parent=0 // pred_fallthru
    _
  // Predicated region
  $region38: #{encoder_forward.1} parent=0 // pred_check
    _
  $region39: #{encoder_forward.1} parent=0 // pred_check_branch
    %36 = sbr.rel (0) target = $region41
  $region40: #{encoder_forward.1} parent=0 // pred_region
    _
  $region41: #{encoder_forward.1} parent=0 // pred_fallthru
    _
  // Predicated region
  $region42: #{encoder_forward.1} parent=0 // pred_check
    _
  $region43: #{encoder_forward.1} parent=0 // pred_check_branch
    %38 = sbr.rel (0) target = $region45
  $region44: #{encoder_forward.1} parent=0 // pred_region
    _
  $region45: #{encoder_forward.1} parent=0 // pred_fallthru
    _
  // Predicated region
  $region46: #{encoder_forward.1} parent=0 // pred_check
    _
  $region47: #{encoder_forward.1} parent=0 // pred_check_branch
    %40 = sbr.rel (0) target = $region49
  $region48: #{encoder_forward.1} parent=0 // pred_region
    _
  $region49: #{encoder_forward.1} parent=0 // pred_fallthru
    _
  %v42 = vld [vmem:[%s0] sm:$0x33]
  %v43 = vld [vmem:[%s0 + $0x8] sm:$0x33]
  %v46 = vrot.slane %v42, 2
  %v47 = vrot.slane %v43, 2
  %vm48 = vcmask 1041408
  %v51 = vsel %vm48, %v42, %v46
  %v54 = vsel %vm48, %v43, %v47
  %v55 = vld [vmem:[%s1] sm:$0xf]
  %v56 = vld [vmem:[%s1 + $0x4] sm:$0xf]
  %v57 = vld [vmem:[%s1 + $0x8] sm:$0xf]
  %v58 = vld [vmem:[%s1 + $0xc] sm:$0xf]
  %v59 = vld [vmem:[%s1 + $0x10] sm:$0xf]
  %v60 = vld [vmem:[%s1 + $0x14] sm:$0xf]
  %v61 = vld [vmem:[%s1 + $0x18] sm:$0xf]
  %v62 = vld [vmem:[%s1 + $0x1c] sm:$0xf]
  %v63 = vld [vmem:[%s1 + $0x20] sm:$0xf]
  %v64 = vld [vmem:[%s1 + $0x24] sm:$0xf]
  %v65 = vld [vmem:[%s1 + $0x28] sm:$0xf]
  %v66 = vld [vmem:[%s1 + $0x2c] sm:$0xf]
  %v67 = vld [vmem:[%s1 + $0x30] sm:$0xf]
  %v68 = vld [vmem:[%s1 + $0x34] sm:$0xf]
  %v69 = vld [vmem:[%s1 + $0x38] sm:$0xf]
  %v70 = vld [vmem:[%s1 + $0x3c] sm:$0xf]
  %v71 = vld [vmem:[%s1 + $0x40] sm:$0xf]
  %v72 = vld [vmem:[%s1 + $0x44] sm:$0xf]
  %v73 = vld [vmem:[%s1 + $0x48] sm:$0xf]
  %v74 = vld [vmem:[%s1 + $0x4c] sm:$0xf]
  %v75 = vld [vmem:[%s1 + $0x50] sm:$0xf]
  %v76 = vld [vmem:[%s1 + $0x54] sm:$0xf]
  %v77 = vld [vmem:[%s1 + $0x58] sm:$0xf]
  %v78 = vld [vmem:[%s1 + $0x5c] sm:$0xf]
  %v79 = vld [vmem:[%s1 + $0x60] sm:$0xf]
  %v80 = vld [vmem:[%s1 + $0x64] sm:$0xf]
  %v81 = vld [vmem:[%s1 + $0x68] sm:$0xf]
  %v82 = vld [vmem:[%s1 + $0x6c] sm:$0xf]
  %v83 = vld [vmem:[%s1 + $0x70] sm:$0xf]
  %v84 = vld [vmem:[%s1 + $0x74] sm:$0xf]
  %v85 = vld [vmem:[%s1 + $0x78] sm:$0xf]
  %v86 = vld [vmem:[%s1 + $0x7c] sm:$0xf]
  %v87 = vld [vmem:[%s4] sm:$0x1]
  %v89 = vperm.slane %v87, 0
  %91 = vst [vmem:[#allocation1] ss:$4 sm:$0xff] %v51
  %s92 = scalar_lea.vmem [#allocation1], 1
  %93 = vst [vmem:[%s92] ss:$4 sm:$0xff] %v54
  %v94 = vld.sshfl [vmem:[#allocation1] sm:$0xff pattern:$0x73625140]
  %v95 = vld.sshfl [vmem:[#allocation1 + $0x8] sm:$0xff pattern:$0x73625140]
  %v130 = vunpack.c.l.b16 %v55
  %v131 = vunpack.c.l.b16 %v56
  %v132 = vunpack.c.l.b16 %v57
  %v133 = vunpack.c.l.b16 %v58
  %v134 = vunpack.c.l.b16 %v59
  %v135 = vunpack.c.l.b16 %v60
  %v136 = vunpack.c.l.b16 %v61
  %v137 = vunpack.c.l.b16 %v62
  %v138 = vunpack.c.l.b16 %v63
  %v139 = vunpack.c.l.b16 %v64
  %v140 = vunpack.c.l.b16 %v65
  %v141 = vunpack.c.l.b16 %v66
  %v142 = vunpack.c.l.b16 %v67
  %v143 = vunpack.c.l.b16 %v68
  %v144 = vunpack.c.l.b16 %v69
  %v145 = vunpack.c.l.b16 %v70
  %v146 = vunpack.c.l.b16 %v71
  %v147 = vunpack.c.l.b16 %v72
  %v148 = vunpack.c.l.b16 %v73
  %v149 = vunpack.c.l.b16 %v74
  %v150 = vunpack.c.l.b16 %v75
  %v151 = vunpack.c.l.b16 %v76
  %v152 = vunpack.c.l.b16 %v77
  %v153 = vunpack.c.l.b16 %v78
  %v154 = vunpack.c.l.b16 %v79
  %v155 = vunpack.c.l.b16 %v80
  %v156 = vunpack.c.l.b16 %v81
  %v157 = vunpack.c.l.b16 %v82
  %v158 = vunpack.c.l.b16 %v83
  %v159 = vunpack.c.l.b16 %v84
  %v160 = vunpack.c.l.b16 %v85
  %v161 = vunpack.c.l.b16 %v86
  %v162 = vpack.c.b16 %v131, %v130
  %v163 = vpack.c.b16 %v133, %v132
  %v164 = vpack.c.b16 %v135, %v134
  %v165 = vpack.c.b16 %v137, %v136
  %v166 = vpack.c.b16 %v139, %v138
  %v167 = vpack.c.b16 %v141, %v140
  %v168 = vpack.c.b16 %v143, %v142
  %v169 = vpack.c.b16 %v145, %v144
  %v170 = vpack.c.b16 %v147, %v146
  %v171 = vpack.c.b16 %v149, %v148
  %v172 = vpack.c.b16 %v151, %v150
  %v173 = vpack.c.b16 %v153, %v152
  %v174 = vpack.c.b16 %v155, %v154
  %v175 = vpack.c.b16 %v157, %v156
  %v176 = vpack.c.b16 %v159, %v158
  %v177 = vpack.c.b16 %v161, %v160
  %194 = vmatpush.bf16.msra.mxu0 %v169
  %195 = vmatpush.bf16.msra.mxu0 %v168
  %196 = vmatpush.bf16.msra.mxu0 %v167
  %197 = vmatpush.bf16.msra.mxu0 %v166
  %198 = vmatpush.bf16.msra.mxu0 %v165
  %199 = vmatpush.bf16.msra.mxu0 %v164
  %200 = vmatpush.bf16.msra.mxu0 %v163
  %201 = vmatpush.bf16.msra.mxu0 %v162
  %202 = vmatmul.bf16.gmra.mxu0 %v94
  %v203 = vpop.f32.mrf.mxu0
  %v204 = vadd.f32 %v89, %v203
  %v205 = vpop.f32.mrf.mxu0
  %206 = vdwg.mxu0
  %207 = vmatpush.bf16.msra.mxu0 %v177
  %208 = vmatpush.bf16.msra.mxu0 %v176
  %209 = vmatpush.bf16.msra.mxu0 %v175
  %210 = vmatpush.bf16.msra.mxu0 %v174
  %211 = vmatpush.bf16.msra.mxu0 %v173
  %212 = vmatpush.bf16.msra.mxu0 %v172
  %213 = vmatpush.bf16.msra.mxu0 %v171
  %214 = vmatpush.bf16.msra.mxu0 %v170
  %215 = vmatmul.bf16.gmra.mxu0 %v95
  %v216 = vpop.f32.mrf.mxu0
  %v217 = vadd.f32 %v204, %v216
  %v218 = vpop.f32.mrf.mxu0
  %219 = vdwg.mxu0
  %v220 = vmax.f32 %v217, 0.0
  %v221 = vpack.c.bf16 %v220, %v220
  %v223 = vrot.slane %v221, 2
  %v226 = vsel %vm48, %v221, %v223
  %vm227 = vcmask 1043458
  %v228 = vsel %vm227, %v221, %v223
  %v230 = vrot.slane %v228, 2
  %v232 = vsel %vm48, %v226, 0
  %v235 = vsel %vm48, %v230, 0
  %vm237 = vcmask 1042432
  %vm238 = vsmask.f32 2304
  %vm239 = vmand %vm237, %vm238
  %v240 = vld [vmem:[#allocation2 + $0x4] sm:$0x7]
  %v241 = vsel %vm239, %v232, %v240
  %242 = vst [vmem:[#allocation2 + $0x4] sm:$0x7] %v241
  %v243 = vld [vmem:[#allocation2 + $0xc] sm:$0x7]
  %v244 = vsel %vm239, %v235, %v243
  %245 = vst [vmem:[#allocation2 + $0xc] sm:$0x7] %v244
  %v246 = vld [vmem:[%s0 + $0x4] sm:$0x3]
  %v247 = vld [vmem:[%s0 + $0xc] sm:$0x3]
  %v248 = vld [vmem:[%s0] sm:$0x7]
  %v249 = vld [vmem:[%s0 + $0x8] sm:$0x7]
  %v252 = vrot.slane %v248, 2
  %v253 = vrot.slane %v249, 2
  %v256 = vsel %vm48, %v248, %v252
  %v257 = vsel %vm227, %v248, %v252
  %v259 = vrot.slane %v257, 2
  %v262 = vsel %vm48, %v249, %v253
  %v263 = vsel %vm227, %v249, %v253
  %v265 = vrot.slane %v263, 2
  %vm266 = vsmask.f32 1280
  %vm267 = vsmask.f32 3336
  %vm268 = vmor %vm266, %vm267
  %vm269 = vsmask.f32 5392
  %vm270 = vmor %vm268, %vm269
  %vm271 = vsmask.f32 7448
  %vm272 = vmor %vm270, %vm271
  %v273 = vshrl.u32 %v256, 16
  %v275 = vrot.slane %v273, 6
  %v276 = vshll.u32 %v256, 16
  %v278 = vrot.slane %v276, 7
  %v279 = vor.u32 %v275, %v278
  %v280 = vrot.slane %v279, 2
  %v282 = vshll.u32 %v259, 16
  %v284 = vrot.slane %v282, 7
  %v285 = vsel %vm272, %v280, %v284
  %v286 = vshrl.u32 %v262, 16
  %v288 = vrot.slane %v286, 6
  %v289 = vshll.u32 %v262, 16
  %v291 = vrot.slane %v289, 7
  %v292 = vor.u32 %v288, %v291
  %v293 = vrot.slane %v292, 2
  %v295 = vshll.u32 %v265, 16
  %v297 = vrot.slane %v295, 7
  %v298 = vsel %vm272, %v293, %v297
  %v299 = vld [vmem:[%s2] sm:$0xf]
  %v300 = vld [vmem:[%s2 + $0x4] sm:$0xf]
  %v301 = vld [vmem:[%s2 + $0x8] sm:$0xf]
  %v302 = vld [vmem:[%s2 + $0xc] sm:$0xf]
  %v303 = vld [vmem:[%s2 + $0x10] sm:$0xf]
  %v304 = vld [vmem:[%s2 + $0x14] sm:$0xf]
  %v305 = vld [vmem:[%s2 + $0x18] sm:$0xf]
  %v306 = vld [vmem:[%s2 + $0x1c] sm:$0xf]
  %v307 = vld [vmem:[%s2 + $0x20] sm:$0xf]
  %v308 = vld [vmem:[%s2 + $0x24] sm:$0xf]
  %v309 = vld [vmem:[%s2 + $0x28] sm:$0xf]
  %v310 = vld [vmem:[%s2 + $0x2c] sm:$0xf]
  %v311 = vld [vmem:[%s2 + $0x30] sm:$0xf]
  %v312 = vld [vmem:[%s2 + $0x34] sm:$0xf]
  %v313 = vld [vmem:[%s2 + $0x38] sm:$0xf]
  %v314 = vld [vmem:[%s2 + $0x3c] sm:$0xf]
  %v315 = vld [vmem:[%s3] sm:$0xf]
  %v316 = vld [vmem:[%s3 + $0x4] sm:$0xf]
  %v317 = vld [vmem:[%s3 + $0x8] sm:$0xf]
  %v318 = vld [vmem:[%s3 + $0xc] sm:$0xf]
  %v319 = vld [vmem:[%s3 + $0x10] sm:$0xf]
  %v320 = vld [vmem:[%s3 + $0x14] sm:$0xf]
  %v321 = vld [vmem:[%s3 + $0x18] sm:$0xf]
  %v322 = vld [vmem:[%s3 + $0x1c] sm:$0xf]
  %v323 = vld [vmem:[%s3 + $0x20] sm:$0xf]
  %v324 = vld [vmem:[%s3 + $0x24] sm:$0xf]
  %v325 = vld [vmem:[%s3 + $0x28] sm:$0xf]
  %v326 = vld [vmem:[%s3 + $0x2c] sm:$0xf]
  %v327 = vld [vmem:[%s3 + $0x30] sm:$0xf]
  %v328 = vld [vmem:[%s3 + $0x34] sm:$0xf]
  %v329 = vld [vmem:[%s3 + $0x38] sm:$0xf]
  %v330 = vld [vmem:[%s3 + $0x3c] sm:$0xf]
  %332 = vst [vmem:[#allocation1] ss:$4 sm:$0xff] %v285
  %s334 = scalar_lea.vmem [#allocation1], 1
  %335 = vst [vmem:[%s334] ss:$4 sm:$0xff] %v298
  %v336 = vld.sshfl [vmem:[#allocation1] sm:$0xff pattern:$0x73625140]
  %v354 = vunpack.c.l.b16 %v315
  %v355 = vunpack.c.l.b16 %v316
  %v356 = vunpack.c.l.b16 %v317
  %v357 = vunpack.c.l.b16 %v318
  %v358 = vunpack.c.l.b16 %v319
  %v359 = vunpack.c.l.b16 %v320
  %v360 = vunpack.c.l.b16 %v321
  %v361 = vunpack.c.l.b16 %v322
  %v362 = vunpack.c.l.b16 %v323
  %v363 = vunpack.c.l.b16 %v324
  %v364 = vunpack.c.l.b16 %v325
  %v365 = vunpack.c.l.b16 %v326
  %v366 = vunpack.c.l.b16 %v327
  %v367 = vunpack.c.l.b16 %v328
  %v368 = vunpack.c.l.b16 %v329
  %v369 = vunpack.c.l.b16 %v330
  %v370 = vpack.c.b16 %v355, %v354
  %v371 = vpack.c.b16 %v357, %v356
  %v372 = vpack.c.b16 %v359, %v358
  %v373 = vpack.c.b16 %v361, %v360
  %v374 = vpack.c.b16 %v363, %v362
  %v375 = vpack.c.b16 %v365, %v364
  %v376 = vpack.c.b16 %v367, %v366
  %v377 = vpack.c.b16 %v369, %v368
  %386 = vmatpush.bf16.msra.mxu0 %v377
  %387 = vmatpush.bf16.msra.mxu0 %v376
  %388 = vmatpush.bf16.msra.mxu0 %v375
  %389 = vmatpush.bf16.msra.mxu0 %v374
  %390 = vmatpush.bf16.msra.mxu0 %v373
  %391 = vmatpush.bf16.msra.mxu0 %v372
  %392 = vmatpush.bf16.msra.mxu0 %v371
  %393 = vmatpush.bf16.msra.mxu0 %v370
  %394 = vmatmul.bf16.gmra.mxu0 %v336
  %v395 = vpop.f32.mrf.mxu0
  %v396 = vadd.f32 0.0, %v395
  %v397 = vpop.f32.mrf.mxu0
  %398 = vdwg.mxu0
  %400 = vst [vmem:[#allocation1] ss:$4 sm:$0xff] %v246
  %s402 = scalar_lea.vmem [#allocation1], 1
  %403 = vst [vmem:[%s402] ss:$4 sm:$0xff] %v247
  %v404 = vld.sshfl [vmem:[#allocation1] sm:$0xff pattern:$0x73625140]
  %v422 = vunpack.c.l.b16 %v299
  %v423 = vunpack.c.l.b16 %v300
  %v424 = vunpack.c.l.b16 %v301
  %v425 = vunpack.c.l.b16 %v302
  %v426 = vunpack.c.l.b16 %v303
  %v427 = vunpack.c.l.b16 %v304
  %v428 = vunpack.c.l.b16 %v305
  %v429 = vunpack.c.l.b16 %v306
  %v430 = vunpack.c.l.b16 %v307
  %v431 = vunpack.c.l.b16 %v308
  %v432 = vunpack.c.l.b16 %v309
  %v433 = vunpack.c.l.b16 %v310
  %v434 = vunpack.c.l.b16 %v311
  %v435 = vunpack.c.l.b16 %v312
  %v436 = vunpack.c.l.b16 %v313
  %v437 = vunpack.c.l.b16 %v314
  %v438 = vpack.c.b16 %v423, %v422
  %v439 = vpack.c.b16 %v425, %v424
  %v440 = vpack.c.b16 %v427, %v426
  %v441 = vpack.c.b16 %v429, %v428
  %v442 = vpack.c.b16 %v431, %v430
  %v443 = vpack.c.b16 %v433, %v432
  %v444 = vpack.c.b16 %v435, %v434
  %v445 = vpack.c.b16 %v437, %v436
  %454 = vmatpush.bf16.msra.mxu0 %v445
  %455 = vmatpush.bf16.msra.mxu0 %v444
  %456 = vmatpush.bf16.msra.mxu0 %v443
  %457 = vmatpush.bf16.msra.mxu0 %v442
  %458 = vmatpush.bf16.msra.mxu0 %v441
  %459 = vmatpush.bf16.msra.mxu0 %v440
  %460 = vmatpush.bf16.msra.mxu0 %v439
  %461 = vmatpush.bf16.msra.mxu0 %v438
  %462 = vmatmul.bf16.gmra.mxu0 %v404
  %v463 = vpop.f32.mrf.mxu0
  %v464 = vadd.f32 %v396, %v463
  %v465 = vpop.f32.mrf.mxu0
  %466 = vdwg.mxu0
  %v467 = vld [vmem:[%s4] sm:$0x1]
  %v469 = vperm.slane %v467, 0
  %v471 = vadd.f32 %v464, %v469
  %v472 = vmax.f32 %v471, 0.0
  %v473 = vpack.c.bf16 %v472, %v472
  %v475 = vrot.slane %v473, 2
  %v478 = vsel %vm48, %v473, %v475
  %v479 = vsel %vm227, %v473, %v475
  %v481 = vrot.slane %v479, 2
  %482 = vst [vmem:[#allocation1] ss:$4 sm:$0xff] %v478
  %v483 = vld.sshfl [vmem:[#allocation1] sm:$0xff pattern:$0x73625140]
  %s485 = scalar_lea.vmem [#allocation1], 32
  %486 = vst [vmem:[%s485] ss:$4 sm:$0xff] %v481
  %v487 = vld.sshfl [vmem:[#allocation1 + $0x20] sm:$0xff pattern:$0x73625140]
  %v488 = vshrl.u32 %v483, 16
  %v490 = vrot.slane %v488, 7
  %v491 = vshll.u32 %v483, 16
  %v493 = vor.u32 %v490, %v491
  %v494 = vshrl.u32 %v487, 16
  %v496 = vrot.slane %v494, 7
  %v497 = vshll.u32 %v487, 16
  %v499 = vor.u32 %v496, %v497
  %vm502 = vcmask 1040384
  %vm503 = vsmask.f32 256
  %vm504 = vmand %vm502, %vm503
  %v505 = vsel %vm504, 0, %v493
  %v506 = vsel %vm504, 0, %v499
  %v507 = vld [vmem:[#allocation2] sm:$0x7]
  %v508 = vsel %vm239, %v505, %v507
  %509 = vst [vmem:[#allocation2] sm:$0x7] %v508
  %v510 = vld [vmem:[#allocation2 + $0x8] sm:$0x7]
  %v511 = vsel %vm239, %v506, %v510
  %512 = vst [vmem:[#allocation2 + $0x8] sm:$0x7] %v511
  %v513 = vld [vmem:[#allocation2] sm:$0x33]
  %v514 = vld [vmem:[#allocation2 + $0x8] sm:$0x33]
  %v517 = vrot.slane %v513, 2
  %v518 = vrot.slane %v514, 2
  %v521 = vsel %vm48, %v513, %v517
  %v524 = vsel %vm48, %v514, %v518
  %v525 = vld [vmem:[#allocation2] sm:$0x77]
  %v526 = vld [vmem:[#allocation2 + $0x8] sm:$0x77]
  %v529 = vrot.slane %v525, 2
  %v530 = vrot.slane %v526, 2
  %v533 = vsel %vm48, %v525, %v529
  %v534 = vsel %vm227, %v525, %v529
  %v536 = vrot.slane %v534, 2
  %v539 = vsel %vm48, %v526, %v530
  %v540 = vsel %vm227, %v526, %v530
  %v542 = vrot.slane %v540, 2
  %v543 = vshrl.u32 %v533, 16
  %v545 = vrot.slane %v543, 6
  %v546 = vshll.u32 %v533, 16
  %v548 = vrot.slane %v546, 7
  %v549 = vor.u32 %v545, %v548
  %v550 = vrot.slane %v549, 2
  %v552 = vshll.u32 %v536, 16
  %v554 = vrot.slane %v552, 7
  %v555 = vsel %vm272, %v550, %v554
  %v556 = vshrl.u32 %v539, 16
  %v558 = vrot.slane %v556, 6
  %v559 = vshll.u32 %v539, 16
  %v561 = vrot.slane %v559, 7
  %v562 = vor.u32 %v558, %v561
  %v563 = vrot.slane %v562, 2
  %v565 = vshll.u32 %v542, 16
  %v567 = vrot.slane %v565, 7
  %v568 = vsel %vm272, %v563, %v567
  %v569 = vld [vmem:[%s5] sm:$0xf]
  %v570 = vld [vmem:[%s5 + $0x4] sm:$0xf]
  %v571 = vld [vmem:[%s5 + $0x8] sm:$0xf]
  %v572 = vld [vmem:[%s5 + $0xc] sm:$0xf]
  %v573 = vld [vmem:[%s5 + $0x10] sm:$0xf]
  %v574 = vld [vmem:[%s5 + $0x14] sm:$0xf]
  %v575 = vld [vmem:[%s5 + $0x18] sm:$0xf]
  %v576 = vld [vmem:[%s5 + $0x1c] sm:$0xf]
  %v577 = vld [vmem:[%s5 + $0x20] sm:$0xf]
  %v578 = vld [vmem:[%s5 + $0x24] sm:$0xf]
  %v579 = vld [vmem:[%s5 + $0x28] sm:$0xf]
  %v580 = vld [vmem:[%s5 + $0x2c] sm:$0xf]
  %v581 = vld [vmem:[%s5 + $0x30] sm:$0xf]
  %v582 = vld [vmem:[%s5 + $0x34] sm:$0xf]
  %v583 = vld [vmem:[%s5 + $0x38] sm:$0xf]
  %v584 = vld [vmem:[%s5 + $0x3c] sm:$0xf]
  %v585 = vld [vmem:[%s5 + $0x40] sm:$0xf]
  %v586 = vld [vmem:[%s5 + $0x44] sm:$0xf]
  %v587 = vld [vmem:[%s5 + $0x48] sm:$0xf]
  %v588 = vld [vmem:[%s5 + $0x4c] sm:$0xf]
  %v589 = vld [vmem:[%s5 + $0x50] sm:$0xf]
  %v590 = vld [vmem:[%s5 + $0x54] sm:$0xf]
  %v591 = vld [vmem:[%s5 + $0x58] sm:$0xf]
  %v592 = vld [vmem:[%s5 + $0x5c] sm:$0xf]
  %v593 = vld [vmem:[%s5 + $0x60] sm:$0xf]
  %v594 = vld [vmem:[%s5 + $0x64] sm:$0xf]
  %v595 = vld [vmem:[%s5 + $0x68] sm:$0xf]
  %v596 = vld [vmem:[%s5 + $0x6c] sm:$0xf]
  %v597 = vld [vmem:[%s5 + $0x70] sm:$0xf]
  %v598 = vld [vmem:[%s5 + $0x74] sm:$0xf]
  %v599 = vld [vmem:[%s5 + $0x78] sm:$0xf]
  %v600 = vld [vmem:[%s5 + $0x7c] sm:$0xf]
  %v601 = vld [vmem:[%s6] sm:$0xf]
  %v602 = vld [vmem:[%s6 + $0x4] sm:$0xf]
  %v603 = vld [vmem:[%s6 + $0x8] sm:$0xf]
  %v604 = vld [vmem:[%s6 + $0xc] sm:$0xf]
  %v605 = vld [vmem:[%s6 + $0x10] sm:$0xf]
  %v606 = vld [vmem:[%s6 + $0x14] sm:$0xf]
  %v607 = vld [vmem:[%s6 + $0x18] sm:$0xf]
  %v608 = vld [vmem:[%s6 + $0x1c] sm:$0xf]
  %v609 = vld [vmem:[%s6 + $0x20] sm:$0xf]
  %v610 = vld [vmem:[%s6 + $0x24] sm:$0xf]
  %v611 = vld [vmem:[%s6 + $0x28] sm:$0xf]
  %v612 = vld [vmem:[%s6 + $0x2c] sm:$0xf]
  %v613 = vld [vmem:[%s6 + $0x30] sm:$0xf]
  %v614 = vld [vmem:[%s6 + $0x34] sm:$0xf]
  %v615 = vld [vmem:[%s6 + $0x38] sm:$0xf]
  %v616 = vld [vmem:[%s6 + $0x3c] sm:$0xf]
  %v617 = vld [vmem:[%s6 + $0x40] sm:$0xf]
  %v618 = vld [vmem:[%s6 + $0x44] sm:$0xf]
  %v619 = vld [vmem:[%s6 + $0x48] sm:$0xf]
  %v620 = vld [vmem:[%s6 + $0x4c] sm:$0xf]
  %v621 = vld [vmem:[%s6 + $0x50] sm:$0xf]
  %v622 = vld [vmem:[%s6 + $0x54] sm:$0xf]
  %v623 = vld [vmem:[%s6 + $0x58] sm:$0xf]
  %v624 = vld [vmem:[%s6 + $0x5c] sm:$0xf]
  %v625 = vld [vmem:[%s6 + $0x60] sm:$0xf]
  %v626 = vld [vmem:[%s6 + $0x64] sm:$0xf]
  %v627 = vld [vmem:[%s6 + $0x68] sm:$0xf]
  %v628 = vld [vmem:[%s6 + $0x6c] sm:$0xf]
  %v629 = vld [vmem:[%s6 + $0x70] sm:$0xf]
  %v630 = vld [vmem:[%s6 + $0x74] sm:$0xf]
  %v631 = vld [vmem:[%s6 + $0x78] sm:$0xf]
  %v632 = vld [vmem:[%s6 + $0x7c] sm:$0xf]
  %634 = vst [vmem:[#allocation1] ss:$4 sm:$0xff] %v555
  %s636 = scalar_lea.vmem [#allocation1], 1
  %637 = vst [vmem:[%s636] ss:$4 sm:$0xff] %v568
  %v638 = vld.sshfl [vmem:[#allocation1] sm:$0xff pattern:$0x73625140]
  %v639 = vld.sshfl [vmem:[#allocation1 + $0x8] sm:$0xff pattern:$0x73625140]
  %v674 = vunpack.c.l.b16 %v601
  %v675 = vunpack.c.l.b16 %v602
  %v676 = vunpack.c.l.b16 %v603
  %v677 = vunpack.c.l.b16 %v604
  %v678 = vunpack.c.l.b16 %v605
  %v679 = vunpack.c.l.b16 %v606
  %v680 = vunpack.c.l.b16 %v607
  %v681 = vunpack.c.l.b16 %v608
  %v682 = vunpack.c.l.b16 %v609
  %v683 = vunpack.c.l.b16 %v610
  %v684 = vunpack.c.l.b16 %v611
  %v685 = vunpack.c.l.b16 %v612
  %v686 = vunpack.c.l.b16 %v613
  %v687 = vunpack.c.l.b16 %v614
  %v688 = vunpack.c.l.b16 %v615
  %v689 = vunpack.c.l.b16 %v616
  %v690 = vunpack.c.l.b16 %v617
  %v691 = vunpack.c.l.b16 %v618
  %v692 = vunpack.c.l.b16 %v619
  %v693 = vunpack.c.l.b16 %v620
  %v694 = vunpack.c.l.b16 %v621
  %v695 = vunpack.c.l.b16 %v622
  %v696 = vunpack.c.l.b16 %v623
  %v697 = vunpack.c.l.b16 %v624
  %v698 = vunpack.c.l.b16 %v625
  %v699 = vunpack.c.l.b16 %v626
  %v700 = vunpack.c.l.b16 %v627
  %v701 = vunpack.c.l.b16 %v628
  %v702 = vunpack.c.l.b16 %v629
  %v703 = vunpack.c.l.b16 %v630
  %v704 = vunpack.c.l.b16 %v631
  %v705 = vunpack.c.l.b16 %v632
  %v706 = vpack.c.b16 %v675, %v674
  %v707 = vpack.c.b16 %v677, %v676
  %v708 = vpack.c.b16 %v679, %v678
  %v709 = vpack.c.b16 %v681, %v680
  %v710 = vpack.c.b16 %v683, %v682
  %v711 = vpack.c.b16 %v685, %v684
  %v712 = vpack.c.b16 %v687, %v686
  %v713 = vpack.c.b16 %v689, %v688
  %v714 = vpack.c.b16 %v691, %v690
  %v715 = vpack.c.b16 %v693, %v692
  %v716 = vpack.c.b16 %v695, %v694
  %v717 = vpack.c.b16 %v697, %v696
  %v718 = vpack.c.b16 %v699, %v698
  %v719 = vpack.c.b16 %v701, %v700
  %v720 = vpack.c.b16 %v703, %v702
  %v721 = vpack.c.b16 %v705, %v704
  %738 = vmatpush.bf16.msra.mxu0 %v713
  %739 = vmatpush.bf16.msra.mxu0 %v712
  %740 = vmatpush.bf16.msra.mxu0 %v711
  %741 = vmatpush.bf16.msra.mxu0 %v710
  %742 = vmatpush.bf16.msra.mxu0 %v709
  %743 = vmatpush.bf16.msra.mxu0 %v708
  %744 = vmatpush.bf16.msra.mxu0 %v707
  %745 = vmatpush.bf16.msra.mxu0 %v706
  %746 = vmatmul.bf16.gmra.mxu0 %v638
  %v747 = vpop.f32.mrf.mxu0
  %v748 = vadd.f32 0.0, %v747
  %v749 = vpop.f32.mrf.mxu0
  %750 = vdwg.mxu0
  %751 = vmatpush.bf16.msra.mxu0 %v721
  %752 = vmatpush.bf16.msra.mxu0 %v720
  %753 = vmatpush.bf16.msra.mxu0 %v719
  %754 = vmatpush.bf16.msra.mxu0 %v718
  %755 = vmatpush.bf16.msra.mxu0 %v717
  %756 = vmatpush.bf16.msra.mxu0 %v716
  %757 = vmatpush.bf16.msra.mxu0 %v715
  %758 = vmatpush.bf16.msra.mxu0 %v714
  %759 = vmatmul.bf16.gmra.mxu0 %v639
  %v760 = vpop.f32.mrf.mxu0
  %v761 = vadd.f32 %v748, %v760
  %v762 = vpop.f32.mrf.mxu0
  %763 = vdwg.mxu0
  %764 = vst [vmem:[#allocation1] ss:$4 sm:$0xff] %v521
  %s765 = scalar_lea.vmem [#allocation1], 1
  %766 = vst [vmem:[%s765] ss:$4 sm:$0xff] %v524
  %v767 = vld.sshfl [vmem:[#allocation1] sm:$0xff pattern:$0x73625140]
  %v768 = vld.sshfl [vmem:[#allocation1 + $0x8] sm:$0xff pattern:$0x73625140]
  %v803 = vunpack.c.l.b16 %v569
  %v804 = vunpack.c.l.b16 %v570
  %v805 = vunpack.c.l.b16 %v571
  %v806 = vunpack.c.l.b16 %v572
  %v807 = vunpack.c.l.b16 %v573
  %v808 = vunpack.c.l.b16 %v574
  %v809 = vunpack.c.l.b16 %v575
  %v810 = vunpack.c.l.b16 %v576
  %v811 = vunpack.c.l.b16 %v577
  %v812 = vunpack.c.l.b16 %v578
  %v813 = vunpack.c.l.b16 %v579
  %v814 = vunpack.c.l.b16 %v580
  %v815 = vunpack.c.l.b16 %v581
  %v816 = vunpack.c.l.b16 %v582
  %v817 = vunpack.c.l.b16 %v583
  %v818 = vunpack.c.l.b16 %v584
  %v819 = vunpack.c.l.b16 %v585
  %v820 = vunpack.c.l.b16 %v586
  %v821 = vunpack.c.l.b16 %v587
  %v822 = vunpack.c.l.b16 %v588
  %v823 = vunpack.c.l.b16 %v589
  %v824 = vunpack.c.l.b16 %v590
  %v825 = vunpack.c.l.b16 %v591
  %v826 = vunpack.c.l.b16 %v592
  %v827 = vunpack.c.l.b16 %v593
  %v828 = vunpack.c.l.b16 %v594
  %v829 = vunpack.c.l.b16 %v595
  %v830 = vunpack.c.l.b16 %v596
  %v831 = vunpack.c.l.b16 %v597
  %v832 = vunpack.c.l.b16 %v598
  %v833 = vunpack.c.l.b16 %v599
  %v834 = vunpack.c.l.b16 %v600
  %v835 = vpack.c.b16 %v804, %v803
  %v836 = vpack.c.b16 %v806, %v805
  %v837 = vpack.c.b16 %v808, %v807
  %v838 = vpack.c.b16 %v810, %v809
  %v839 = vpack.c.b16 %v812, %v811
  %v840 = vpack.c.b16 %v814, %v813
  %v841 = vpack.c.b16 %v816, %v815
  %v842 = vpack.c.b16 %v818, %v817
  %v843 = vpack.c.b16 %v820, %v819
  %v844 = vpack.c.b16 %v822, %v821
  %v845 = vpack.c.b16 %v824, %v823
  %v846 = vpack.c.b16 %v826, %v825
  %v847 = vpack.c.b16 %v828, %v827
  %v848 = vpack.c.b16 %v830, %v829
  %v849 = vpack.c.b16 %v832, %v831
  %v850 = vpack.c.b16 %v834, %v833
  %867 = vmatpush.bf16.msra.mxu0 %v842
  %868 = vmatpush.bf16.msra.mxu0 %v841
  %869 = vmatpush.bf16.msra.mxu0 %v840
  %870 = vmatpush.bf16.msra.mxu0 %v839
  %871 = vmatpush.bf16.msra.mxu0 %v838
  %872 = vmatpush.bf16.msra.mxu0 %v837
  %873 = vmatpush.bf16.msra.mxu0 %v836
  %874 = vmatpush.bf16.msra.mxu0 %v835
  %875 = vmatmul.bf16.gmra.mxu0 %v767
  %v876 = vpop.f32.mrf.mxu0
  %v877 = vadd.f32 %v761, %v876
  %v878 = vpop.f32.mrf.mxu0
  %879 = vdwg.mxu0
  %880 = vmatpush.bf16.msra.mxu0 %v850
  %881 = vmatpush.bf16.msra.mxu0 %v849
  %882 = vmatpush.bf16.msra.mxu0 %v848
  %883 = vmatpush.bf16.msra.mxu0 %v847
  %884 = vmatpush.bf16.msra.mxu0 %v846
  %885 = vmatpush.bf16.msra.mxu0 %v845
  %886 = vmatpush.bf16.msra.mxu0 %v844
  %887 = vmatpush.bf16.msra.mxu0 %v843
  %888 = vmatmul.bf16.gmra.mxu0 %v768
  %v889 = vpop.f32.mrf.mxu0
  %v890 = vadd.f32 %v877, %v889
  %v891 = vpop.f32.mrf.mxu0
  %892 = vdwg.mxu0
  %v893 = vld [vmem:[%s7] sm:$0x1]
  %v895 = vperm.slane %v893, 0
  %v897 = vadd.f32 %v890, %v895
  %v898 = vmax.f32 %v897, 0.0
  %v899 = vmax.f32 %v898, 0.0
  %v900 = vpack.c.bf16 %v899, %v899
  %v902 = vrot.slane %v900, 2
  %v905 = vsel %vm48, %v900, %v902
  %v906 = vsel %vm227, %v900, %v902
  %v908 = vrot.slane %v906, 2
  %909 = vst [vmem:[#allocation1] ss:$4 sm:$0xff] %v905
  %v910 = vld.sshfl [vmem:[#allocation1] sm:$0xff pattern:$0x73625140]
  %s912 = scalar_lea.vmem [#allocation1], 32
  %913 = vst [vmem:[%s912] ss:$4 sm:$0xff] %v908
  %v914 = vld.sshfl [vmem:[#allocation1 + $0x20] sm:$0xff pattern:$0x73625140]
  %v915 = vshrl.u32 %v910, 16
  %v917 = vrot.slane %v915, 7
  %v918 = vshll.u32 %v910, 16
  %v920 = vor.u32 %v917, %v918
  %v921 = vshrl.u32 %v914, 16
  %v923 = vrot.slane %v921, 7
  %v924 = vshll.u32 %v914, 16
  %v926 = vor.u32 %v923, %v924
  %v929 = vsel %vm504, 0, %v920
  %v930 = vsel %vm504, 0, %v926
  %v931 = vsel %vm239, %v929, 0
  %v932 = vsel %vm239, %v930, 0
  %933 = vst [vmem:[#allocation3] sm:$0x7] %v931
  %934 = vst [vmem:[#allocation3 + $0x4] sm:$0x7] %v932
  %v935 = vld [vmem:[#allocation3] sm:$0x3]
  %v936 = vld [vmem:[#allocation3 + $0x4] sm:$0x3]
  %v937 = vld [vmem:[%s8] sm:$0xf]
  %v938 = vld [vmem:[%s8 + $0x4] sm:$0xf]
  %v939 = vld [vmem:[%s8 + $0x8] sm:$0xf]
  %v940 = vld [vmem:[%s8 + $0xc] sm:$0xf]
  %v941 = vld [vmem:[%s8 + $0x10] sm:$0xf]
  %v942 = vld [vmem:[%s8 + $0x14] sm:$0xf]
  %v943 = vld [vmem:[%s8 + $0x18] sm:$0xf]
  %v944 = vld [vmem:[%s8 + $0x1c] sm:$0xf]
  %v945 = vld [vmem:[%s8 + $0x20] sm:$0xf]
  %v946 = vld [vmem:[%s8 + $0x24] sm:$0xf]
  %v947 = vld [vmem:[%s8 + $0x28] sm:$0xf]
  %v948 = vld [vmem:[%s8 + $0x2c] sm:$0xf]
  %v949 = vld [vmem:[%s8 + $0x30] sm:$0xf]
  %v950 = vld [vmem:[%s8 + $0x34] sm:$0xf]
  %v951 = vld [vmem:[%s8 + $0x38] sm:$0xf]
  %v952 = vld [vmem:[%s8 + $0x3c] sm:$0xf]
  %v953 = vld [vmem:[#allocation3] sm:$0x7]
  %v954 = vld [vmem:[#allocation3 + $0x4] sm:$0x7]
  %v957 = vrot.slane %v953, 2
  %v958 = vrot.slane %v954, 2
  %v961 = vsel %vm48, %v953, %v957
  %v962 = vsel %vm227, %v953, %v957
  %v964 = vrot.slane %v962, 2
  %v967 = vsel %vm48, %v954, %v958
  %v968 = vsel %vm227, %v954, %v958
  %v970 = vrot.slane %v968, 2
  %v971 = vshrl.u32 %v961, 16
  %v973 = vrot.slane %v971, 6
  %v974 = vshll.u32 %v961, 16
  %v976 = vrot.slane %v974, 7
  %v977 = vor.u32 %v973, %v976
  %v978 = vrot.slane %v977, 2
  %v980 = vshll.u32 %v964, 16
  %v982 = vrot.slane %v980, 7
  %v983 = vsel %vm272, %v978, %v982
  %v984 = vshrl.u32 %v967, 16
  %v986 = vrot.slane %v984, 6
  %v987 = vshll.u32 %v967, 16
  %v989 = vrot.slane %v987, 7
  %v990 = vor.u32 %v986, %v989
  %v991 = vrot.slane %v990, 2
  %v993 = vshll.u32 %v970, 16
  %v995 = vrot.slane %v993, 7
  %v996 = vsel %vm272, %v991, %v995
  %s997 = scalar_lea.vmem %s8, 64
  %v998 = vld [vmem:[%s997] sm:$0xf]
  %v999 = vld [vmem:[%s997 + $0x4] sm:$0xf]
  %v1000 = vld [vmem:[%s997 + $0x8] sm:$0xf]
  %v1001 = vld [vmem:[%s997 + $0xc] sm:$0xf]
  %v1002 = vld [vmem:[%s997 + $0x10] sm:$0xf]
  %v1003 = vld [vmem:[%s997 + $0x14] sm:$0xf]
  %v1004 = vld [vmem:[%s997 + $0x18] sm:$0xf]
  %v1005 = vld [vmem:[%s997 + $0x1c] sm:$0xf]
  %v1006 = vld [vmem:[%s997 + $0x20] sm:$0xf]
  %v1007 = vld [vmem:[%s997 + $0x24] sm:$0xf]
  %v1008 = vld [vmem:[%s997 + $0x28] sm:$0xf]
  %v1009 = vld [vmem:[%s997 + $0x2c] sm:$0xf]
  %v1010 = vld [vmem:[%s997 + $0x30] sm:$0xf]
  %v1011 = vld [vmem:[%s997 + $0x34] sm:$0xf]
  %v1012 = vld [vmem:[%s997 + $0x38] sm:$0xf]
  %v1013 = vld [vmem:[%s997 + $0x3c] sm:$0xf]
  %1015 = vst [vmem:[#allocation1] ss:$4 sm:$0xff] %v983
  %s1017 = scalar_lea.vmem [#allocation1], 1
  %1018 = vst [vmem:[%s1017] ss:$4 sm:$0xff] %v996
  %v1019 = vld.sshfl [vmem:[#allocation1] sm:$0xff pattern:$0x73625140]
  %v1037 = vunpack.c.l.b16 %v998
  %v1038 = vunpack.c.l.b16 %v999
  %v1039 = vunpack.c.l.b16 %v1000
  %v1040 = vunpack.c.l.b16 %v1001
  %v1041 = vunpack.c.l.b16 %v1002
  %v1042 = vunpack.c.l.b16 %v1003
  %v1043 = vunpack.c.l.b16 %v1004
  %v1044 = vunpack.c.l.b16 %v1005
  %v1045 = vunpack.c.l.b16 %v1006
  %v1046 = vunpack.c.l.b16 %v1007
  %v1047 = vunpack.c.l.b16 %v1008
  %v1048 = vunpack.c.l.b16 %v1009
  %v1049 = vunpack.c.l.b16 %v1010
  %v1050 = vunpack.c.l.b16 %v1011
  %v1051 = vunpack.c.l.b16 %v1012
  %v1052 = vunpack.c.l.b16 %v1013
  %v1053 = vpack.c.b16 %v1038, %v1037
  %v1054 = vpack.c.b16 %v1040, %v1039
  %v1055 = vpack.c.b16 %v1042, %v1041
  %v1056 = vpack.c.b16 %v1044, %v1043
  %v1057 = vpack.c.b16 %v1046, %v1045
  %v1058 = vpack.c.b16 %v1048, %v1047
  %v1059 = vpack.c.b16 %v1050, %v1049
  %v1060 = vpack.c.b16 %v1052, %v1051
  %1069 = vmatpush.bf16.msra.mxu0 %v1060
  %1070 = vmatpush.bf16.msra.mxu0 %v1059
  %1071 = vmatpush.bf16.msra.mxu0 %v1058
  %1072 = vmatpush.bf16.msra.mxu0 %v1057
  %1073 = vmatpush.bf16.msra.mxu0 %v1056
  %1074 = vmatpush.bf16.msra.mxu0 %v1055
  %1075 = vmatpush.bf16.msra.mxu0 %v1054
  %1076 = vmatpush.bf16.msra.mxu0 %v1053
  %1077 = vmatmul.bf16.gmra.mxu0 %v1019
  %v1078 = vpop.f32.mrf.mxu0
  %v1079 = vadd.f32 0.0, %v1078
  %v1080 = vpop.f32.mrf.mxu0
  %1081 = vdwg.mxu0
  %1083 = vst [vmem:[#allocation1] ss:$4 sm:$0xff] %v935
  %s1085 = scalar_lea.vmem [#allocation1], 1
  %1086 = vst [vmem:[%s1085] ss:$4 sm:$0xff] %v936
  %v1087 = vld.sshfl [vmem:[#allocation1] sm:$0xff pattern:$0x73625140]
  %v1105 = vunpack.c.l.b16 %v937
  %v1106 = vunpack.c.l.b16 %v938
  %v1107 = vunpack.c.l.b16 %v939
  %v1108 = vunpack.c.l.b16 %v940
  %v1109 = vunpack.c.l.b16 %v941
  %v1110 = vunpack.c.l.b16 %v942
  %v1111 = vunpack.c.l.b16 %v943
  %v1112 = vunpack.c.l.b16 %v944
  %v1113 = vunpack.c.l.b16 %v945
  %v1114 = vunpack.c.l.b16 %v946
  %v1115 = vunpack.c.l.b16 %v947
  %v1116 = vunpack.c.l.b16 %v948
  %v1117 = vunpack.c.l.b16 %v949
  %v1118 = vunpack.c.l.b16 %v950
  %v1119 = vunpack.c.l.b16 %v951
  %v1120 = vunpack.c.l.b16 %v952
  %v1121 = vpack.c.b16 %v1106, %v1105
  %v1122 = vpack.c.b16 %v1108, %v1107
  %v1123 = vpack.c.b16 %v1110, %v1109
  %v1124 = vpack.c.b16 %v1112, %v1111
  %v1125 = vpack.c.b16 %v1114, %v1113
  %v1126 = vpack.c.b16 %v1116, %v1115
  %v1127 = vpack.c.b16 %v1118, %v1117
  %v1128 = vpack.c.b16 %v1120, %v1119
  %1137 = vmatpush.bf16.msra.mxu0 %v1128
  %1138 = vmatpush.bf16.msra.mxu0 %v1127
  %1139 = vmatpush.bf16.msra.mxu0 %v1126
  %1140 = vmatpush.bf16.msra.mxu0 %v1125
  %1141 = vmatpush.bf16.msra.mxu0 %v1124
  %1142 = vmatpush.bf16.msra.mxu0 %v1123
  %1143 = vmatpush.bf16.msra.mxu0 %v1122
  %1144 = vmatpush.bf16.msra.mxu0 %v1121
  %1145 = vmatmul.bf16.gmra.mxu0 %v1087
  %v1146 = vpop.f32.mrf.mxu0
  %v1147 = vadd.f32 %v1079, %v1146
  %v1148 = vpop.f32.mrf.mxu0
  %1149 = vdwg.mxu0
  %v1150 = vld [vmem:[#allocation3] sm:$0x6]
  %v1151 = vld [vmem:[#allocation3 + $0x4] sm:$0x6]
  %v1154 = vrot.slane %v1150, 2
  %v1155 = vrot.slane %v1151, 2
  %v1158 = vsel %vm48, %v1150, %v1154
  %v1160 = vsel %vm227, %v1150, %v1154
  %v1162 = vrot.slane %v1160, 2
  %v1165 = vsel %vm48, %v1151, %v1155
  %v1167 = vsel %vm227, %v1151, %v1155
  %v1169 = vrot.slane %v1167, 2
  %vm1170 = vcmask 1042434
  %vm1171 = vmor %vm502, %vm1170
  %vm1172 = vcmask 1044484
  %vm1173 = vmor %vm1171, %vm1172
  %vm1174 = vcmask 1046534
  %vm1175 = vmor %vm1173, %vm1174
  %v1176 = vrot.slane %v1158, 7
  %v1177 = vrot.slane %v1176, 2
  %v1178 = vrot.slane %v1162, 7
  %v1179 = vsel %vm1175, %v1177, %v1178
  %v1180 = vrot.slane %v1165, 7
  %v1181 = vrot.slane %v1180, 2
  %v1182 = vrot.slane %v1169, 7
  %v1183 = vsel %vm1175, %v1181, %v1182
  %s1184 = scalar_lea.vmem %s8, 128
  %v1185 = vld [vmem:[%s1184] sm:$0xf]
  %v1186 = vld [vmem:[%s1184 + $0x4] sm:$0xf]
  %v1187 = vld [vmem:[%s1184 + $0x8] sm:$0xf]
  %v1188 = vld [vmem:[%s1184 + $0xc] sm:$0xf]
  %v1189 = vld [vmem:[%s1184 + $0x10] sm:$0xf]
  %v1190 = vld [vmem:[%s1184 + $0x14] sm:$0xf]
  %v1191 = vld [vmem:[%s1184 + $0x18] sm:$0xf]
  %v1192 = vld [vmem:[%s1184 + $0x1c] sm:$0xf]
  %v1193 = vld [vmem:[%s1184 + $0x20] sm:$0xf]
  %v1194 = vld [vmem:[%s1184 + $0x24] sm:$0xf]
  %v1195 = vld [vmem:[%s1184 + $0x28] sm:$0xf]
  %v1196 = vld [vmem:[%s1184 + $0x2c] sm:$0xf]
  %v1197 = vld [vmem:[%s1184 + $0x30] sm:$0xf]
  %v1198 = vld [vmem:[%s1184 + $0x34] sm:$0xf]
  %v1199 = vld [vmem:[%s1184 + $0x38] sm:$0xf]
  %v1200 = vld [vmem:[%s1184 + $0x3c] sm:$0xf]
  %1202 = vst [vmem:[#allocation1] ss:$4 sm:$0xff] %v1179
  %s1204 = scalar_lea.vmem [#allocation1], 1
  %1205 = vst [vmem:[%s1204] ss:$4 sm:$0xff] %v1183
  %v1206 = vld.sshfl [vmem:[#allocation1] sm:$0xff pattern:$0x73625140]
  %v1224 = vunpack.c.l.b16 %v1185
  %v1225 = vunpack.c.l.b16 %v1186
  %v1226 = vunpack.c.l.b16 %v1187
  %v1227 = vunpack.c.l.b16 %v1188
  %v1228 = vunpack.c.l.b16 %v1189
  %v1229 = vunpack.c.l.b16 %v1190
  %v1230 = vunpack.c.l.b16 %v1191
  %v1231 = vunpack.c.l.b16 %v1192
  %v1232 = vunpack.c.l.b16 %v1193
  %v1233 = vunpack.c.l.b16 %v1194
  %v1234 = vunpack.c.l.b16 %v1195
  %v1235 = vunpack.c.l.b16 %v1196
  %v1236 = vunpack.c.l.b16 %v1197
  %v1237 = vunpack.c.l.b16 %v1198
  %v1238 = vunpack.c.l.b16 %v1199
  %v1239 = vunpack.c.l.b16 %v1200
  %v1240 = vpack.c.b16 %v1225, %v1224
  %v1241 = vpack.c.b16 %v1227, %v1226
  %v1242 = vpack.c.b16 %v1229, %v1228
  %v1243 = vpack.c.b16 %v1231, %v1230
  %v1244 = vpack.c.b16 %v1233, %v1232
  %v1245 = vpack.c.b16 %v1235, %v1234
  %v1246 = vpack.c.b16 %v1237, %v1236
  %v1247 = vpack.c.b16 %v1239, %v1238
  %1256 = vmatpush.bf16.msra.mxu0 %v1247
  %1257 = vmatpush.bf16.msra.mxu0 %v1246
  %1258 = vmatpush.bf16.msra.mxu0 %v1245
  %1259 = vmatpush.bf16.msra.mxu0 %v1244
  %1260 = vmatpush.bf16.msra.mxu0 %v1243
  %1261 = vmatpush.bf16.msra.mxu0 %v1242
  %1262 = vmatpush.bf16.msra.mxu0 %v1241
  %1263 = vmatpush.bf16.msra.mxu0 %v1240
  %1264 = vmatmul.bf16.gmra.mxu0 %v1206
  %v1265 = vpop.f32.mrf.mxu0
  %v1266 = vadd.f32 0.0, %v1265
  %v1267 = vpop.f32.mrf.mxu0
  %1268 = vdwg.mxu0
  %v1269 = vadd.f32 %v1147, %v1266
  %v1270 = vld [vmem:[%s9] sm:$0x1]
  %v1272 = vperm.slane %v1270, 0
  %v1274 = vadd.f32 %v1269, %v1272
  %v1275 = vmax.f32 %v1274, 0.0
  %v1276 = vpack.c.bf16 %v1275, %v1275
  %v1277 = vld [vmem:[%s10] sm:$0xf]
  %v1278 = vld [vmem:[%s10 + $0x4] sm:$0xf]
  %v1279 = vld [vmem:[%s10 + $0x8] sm:$0xf]
  %v1280 = vld [vmem:[%s10 + $0xc] sm:$0xf]
  %v1281 = vld [vmem:[%s10 + $0x10] sm:$0xf]
  %v1282 = vld [vmem:[%s10 + $0x14] sm:$0xf]
  %v1283 = vld [vmem:[%s10 + $0x18] sm:$0xf]
  %v1284 = vld [vmem:[%s10 + $0x1c] sm:$0xf]
  %v1285 = vld [vmem:[%s10 + $0x20] sm:$0xf]
  %v1286 = vld [vmem:[%s10 + $0x24] sm:$0xf]
  %v1287 = vld [vmem:[%s10 + $0x28] sm:$0xf]
  %v1288 = vld [vmem:[%s10 + $0x2c] sm:$0xf]
  %v1289 = vld [vmem:[%s10 + $0x30] sm:$0xf]
  %v1290 = vld [vmem:[%s10 + $0x34] sm:$0xf]
  %v1291 = vld [vmem:[%s10 + $0x38] sm:$0xf]
  %v1292 = vld [vmem:[%s10 + $0x3c] sm:$0xf]
  %v1309 = vunpack.c.l.b16 %v1277
  %v1310 = vunpack.c.l.b16 %v1278
  %v1311 = vunpack.c.l.b16 %v1279
  %v1312 = vunpack.c.l.b16 %v1280
  %v1313 = vunpack.c.l.b16 %v1281
  %v1314 = vunpack.c.l.b16 %v1282
  %v1315 = vunpack.c.l.b16 %v1283
  %v1316 = vunpack.c.l.b16 %v1284
  %v1317 = vunpack.c.l.b16 %v1285
  %v1318 = vunpack.c.l.b16 %v1286
  %v1319 = vunpack.c.l.b16 %v1287
  %v1320 = vunpack.c.l.b16 %v1288
  %v1321 = vunpack.c.l.b16 %v1289
  %v1322 = vunpack.c.l.b16 %v1290
  %v1323 = vunpack.c.l.b16 %v1291
  %v1324 = vunpack.c.l.b16 %v1292
  %v1325 = vpack.c.b16 %v1310, %v1309
  %v1326 = vpack.c.b16 %v1312, %v1311
  %v1327 = vpack.c.b16 %v1314, %v1313
  %v1328 = vpack.c.b16 %v1316, %v1315
  %v1329 = vpack.c.b16 %v1318, %v1317
  %v1330 = vpack.c.b16 %v1320, %v1319
  %v1331 = vpack.c.b16 %v1322, %v1321
  %v1332 = vpack.c.b16 %v1324, %v1323
  %1341 = vmatpush.bf16.msra.mxu0 %v1332
  %1342 = vmatpush.bf16.msra.mxu0 %v1331
  %1343 = vmatpush.bf16.msra.mxu0 %v1330
  %1344 = vmatpush.bf16.msra.mxu0 %v1329
  %1345 = vmatpush.bf16.msra.mxu0 %v1328
  %1346 = vmatpush.bf16.msra.mxu0 %v1327
  %1347 = vmatpush.bf16.msra.mxu0 %v1326
  %1348 = vmatpush.bf16.msra.mxu0 %v1325
  %1349 = vmatmul.bf16.gmra.mxu0 %v1276
  %v1350 = vpop.f32.mrf.mxu0
  %v1351 = vadd.f32 0.0, %v1350
  %v1352 = vpop.f32.mrf.mxu0
  %1353 = vdwg.mxu0
  %v1354 = vadd.f32 %v898, %v1351
  %v1355 = vld [vmem:[%s11] sm:$0x1]
  %v1357 = vperm.slane %v1355, 0
  %v1359 = vadd.f32 %v1354, %v1357
  %v1360 = vmax.f32 %v1359, 0.0
  %v1361 = vpack.c.bf16 %v1360, %v1360
  %v1363 = vrot.slane %v1361, 2
  %v1366 = vsel %vm48, %v1361, %v1363
  %v1367 = vsel %vm227, %v1361, %v1363
  %v1369 = vrot.slane %v1367, 2
  %1370 = vst [vmem:[#allocation1] ss:$4 sm:$0xff] %v1366
  %v1371 = vld.sshfl [vmem:[#allocation1] sm:$0xff pattern:$0x73625140]
  %s1373 = scalar_lea.vmem [#allocation1], 32
  %1374 = vst [vmem:[%s1373] ss:$4 sm:$0xff] %v1369
  %v1375 = vld.sshfl [vmem:[#allocation1 + $0x20] sm:$0xff pattern:$0x73625140]
  %v1376 = vshrl.u32 %v1371, 16
  %v1378 = vrot.slane %v1376, 7
  %v1379 = vshll.u32 %v1371, 16
  %v1381 = vor.u32 %v1378, %v1379
  %v1382 = vshrl.u32 %v1375, 16
  %v1384 = vrot.slane %v1382, 7
  %v1385 = vshll.u32 %v1375, 16
  %v1387 = vor.u32 %v1384, %v1385
  %v1390 = vsel %vm504, 0, %v1381
  %v1391 = vsel %vm504, 0, %v1387
  %v1392 = vsel %vm239, %v1390, 0
  %v1393 = vsel %vm239, %v1391, 0
  %1394 = vst [vmem:[#allocation3] sm:$0x7] %v1392
  %1395 = vst [vmem:[#allocation3 + $0x4] sm:$0x7] %v1393
  %v1396 = vld [vmem:[#allocation3] sm:$0x3]
  %v1397 = vld [vmem:[#allocation3 + $0x4] sm:$0x3]
  %s1398 = scalar_lea.vmem %s8, 192
  %v1399 = vld [vmem:[%s1398] sm:$0xf]
  %v1400 = vld [vmem:[%s1398 + $0x4] sm:$0xf]
  %v1401 = vld [vmem:[%s1398 + $0x8] sm:$0xf]
  %v1402 = vld [vmem:[%s1398 + $0xc] sm:$0xf]
  %v1403 = vld [vmem:[%s1398 + $0x10] sm:$0xf]
  %v1404 = vld [vmem:[%s1398 + $0x14] sm:$0xf]
  %v1405 = vld [vmem:[%s1398 + $0x18] sm:$0xf]
  %v1406 = vld [vmem:[%s1398 + $0x1c] sm:$0xf]
  %v1407 = vld [vmem:[%s1398 + $0x20] sm:$0xf]
  %v1408 = vld [vmem:[%s1398 + $0x24] sm:$0xf]
  %v1409 = vld [vmem:[%s1398 + $0x28] sm:$0xf]
  %v1410 = vld [vmem:[%s1398 + $0x2c] sm:$0xf]
  %v1411 = vld [vmem:[%s1398 + $0x30] sm:$0xf]
  %v1412 = vld [vmem:[%s1398 + $0x34] sm:$0xf]
  %v1413 = vld [vmem:[%s1398 + $0x38] sm:$0xf]
  %v1414 = vld [vmem:[%s1398 + $0x3c] sm:$0xf]
  %v1415 = vld [vmem:[#allocation3] sm:$0x7]
  %v1416 = vld [vmem:[#allocation3 + $0x4] sm:$0x7]
  %v1419 = vrot.slane %v1415, 2
  %v1420 = vrot.slane %v1416, 2
  %v1423 = vsel %vm48, %v1415, %v1419
  %v1424 = vsel %vm227, %v1415, %v1419
  %v1426 = vrot.slane %v1424, 2
  %v1429 = vsel %vm48, %v1416, %v1420
  %v1430 = vsel %vm227, %v1416, %v1420
  %v1432 = vrot.slane %v1430, 2
  %v1433 = vshrl.u32 %v1423, 16
  %v1435 = vrot.slane %v1433, 6
  %v1436 = vshll.u32 %v1423, 16
  %v1438 = vrot.slane %v1436, 7
  %v1439 = vor.u32 %v1435, %v1438
  %v1440 = vrot.slane %v1439, 2
  %v1442 = vshll.u32 %v1426, 16
  %v1444 = vrot.slane %v1442, 7
  %v1445 = vsel %vm272, %v1440, %v1444
  %v1446 = vshrl.u32 %v1429, 16
  %v1448 = vrot.slane %v1446, 6
  %v1449 = vshll.u32 %v1429, 16
  %v1451 = vrot.slane %v1449, 7
  %v1452 = vor.u32 %v1448, %v1451
  %v1453 = vrot.slane %v1452, 2
  %v1455 = vshll.u32 %v1432, 16
  %v1457 = vrot.slane %v1455, 7
  %v1458 = vsel %vm272, %v1453, %v1457
  %s1459 = scalar_lea.vmem %s8, 256
  %v1460 = vld [vmem:[%s1459] sm:$0xf]
  %v1461 = vld [vmem:[%s1459 + $0x4] sm:$0xf]
  %v1462 = vld [vmem:[%s1459 + $0x8] sm:$0xf]
  %v1463 = vld [vmem:[%s1459 + $0xc] sm:$0xf]
  %v1464 = vld [vmem:[%s1459 + $0x10] sm:$0xf]
  %v1465 = vld [vmem:[%s1459 + $0x14] sm:$0xf]
  %v1466 = vld [vmem:[%s1459 + $0x18] sm:$0xf]
  %v1467 = vld [vmem:[%s1459 + $0x1c] sm:$0xf]
  %v1468 = vld [vmem:[%s1459 + $0x20] sm:$0xf]
  %v1469 = vld [vmem:[%s1459 + $0x24] sm:$0xf]
  %v1470 = vld [vmem:[%s1459 + $0x28] sm:$0xf]
  %v1471 = vld [vmem:[%s1459 + $0x2c] sm:$0xf]
  %v1472 = vld [vmem:[%s1459 + $0x30] sm:$0xf]
  %v1473 = vld [vmem:[%s1459 + $0x34] sm:$0xf]
  %v1474 = vld [vmem:[%s1459 + $0x38] sm:$0xf]
  %v1475 = vld [vmem:[%s1459 + $0x3c] sm:$0xf]
  %1477 = vst [vmem:[#allocation1] ss:$4 sm:$0xff] %v1445
  %s1479 = scalar_lea.vmem [#allocation1], 1
  %1480 = vst [vmem:[%s1479] ss:$4 sm:$0xff] %v1458
  %v1481 = vld.sshfl [vmem:[#allocation1] sm:$0xff pattern:$0x73625140]
  %v1499 = vunpack.c.l.b16 %v1460
  %v1500 = vunpack.c.l.b16 %v1461
  %v1501 = vunpack.c.l.b16 %v1462
  %v1502 = vunpack.c.l.b16 %v1463
  %v1503 = vunpack.c.l.b16 %v1464
  %v1504 = vunpack.c.l.b16 %v1465
  %v1505 = vunpack.c.l.b16 %v1466
  %v1506 = vunpack.c.l.b16 %v1467
  %v1507 = vunpack.c.l.b16 %v1468
  %v1508 = vunpack.c.l.b16 %v1469
  %v1509 = vunpack.c.l.b16 %v1470
  %v1510 = vunpack.c.l.b16 %v1471
  %v1511 = vunpack.c.l.b16 %v1472
  %v1512 = vunpack.c.l.b16 %v1473
  %v1513 = vunpack.c.l.b16 %v1474
  %v1514 = vunpack.c.l.b16 %v1475
  %v1515 = vpack.c.b16 %v1500, %v1499
  %v1516 = vpack.c.b16 %v1502, %v1501
  %v1517 = vpack.c.b16 %v1504, %v1503
  %v1518 = vpack.c.b16 %v1506, %v1505
  %v1519 = vpack.c.b16 %v1508, %v1507
  %v1520 = vpack.c.b16 %v1510, %v1509
  %v1521 = vpack.c.b16 %v1512, %v1511
  %v1522 = vpack.c.b16 %v1514, %v1513
  %1531 = vmatpush.bf16.msra.mxu0 %v1522
  %1532 = vmatpush.bf16.msra.mxu0 %v1521
  %1533 = vmatpush.bf16.msra.mxu0 %v1520
  %1534 = vmatpush.bf16.msra.mxu0 %v1519
  %1535 = vmatpush.bf16.msra.mxu0 %v1518
  %1536 = vmatpush.bf16.msra.mxu0 %v1517
  %1537 = vmatpush.bf16.msra.mxu0 %v1516
  %1538 = vmatpush.bf16.msra.mxu0 %v1515
  %1539 = vmatmul.bf16.gmra.mxu0 %v1481
  %v1540 = vpop.f32.mrf.mxu0
  %v1541 = vadd.f32 0.0, %v1540
  %v1542 = vpop.f32.mrf.mxu0
  %1543 = vdwg.mxu0
  %1545 = vst [vmem:[#allocation1] ss:$4 sm:$0xff] %v1396
  %s1547 = scalar_lea.vmem [#allocation1], 1
  %1548 = vst [vmem:[%s1547] ss:$4 sm:$0xff] %v1397
  %v1549 = vld.sshfl [vmem:[#allocation1] sm:$0xff pattern:$0x73625140]
  %v1567 = vunpack.c.l.b16 %v1399
  %v1568 = vunpack.c.l.b16 %v1400
  %v1569 = vunpack.c.l.b16 %v1401
  %v1570 = vunpack.c.l.b16 %v1402
  %v1571 = vunpack.c.l.b16 %v1403
  %v1572 = vunpack.c.l.b16 %v1404
  %v1573 = vunpack.c.l.b16 %v1405
  %v1574 = vunpack.c.l.b16 %v1406
  %v1575 = vunpack.c.l.b16 %v1407
  %v1576 = vunpack.c.l.b16 %v1408
  %v1577 = vunpack.c.l.b16 %v1409
  %v1578 = vunpack.c.l.b16 %v1410
  %v1579 = vunpack.c.l.b16 %v1411
  %v1580 = vunpack.c.l.b16 %v1412
  %v1581 = vunpack.c.l.b16 %v1413
  %v1582 = vunpack.c.l.b16 %v1414
  %v1583 = vpack.c.b16 %v1568, %v1567
  %v1584 = vpack.c.b16 %v1570, %v1569
  %v1585 = vpack.c.b16 %v1572, %v1571
  %v1586 = vpack.c.b16 %v1574, %v1573
  %v1587 = vpack.c.b16 %v1576, %v1575
  %v1588 = vpack.c.b16 %v1578, %v1577
  %v1589 = vpack.c.b16 %v1580, %v1579
  %v1590 = vpack.c.b16 %v1582, %v1581
  %1599 = vmatpush.bf16.msra.mxu0 %v1590
  %1600 = vmatpush.bf16.msra.mxu0 %v1589
  %1601 = vmatpush.bf16.msra.mxu0 %v1588
  %1602 = vmatpush.bf16.msra.mxu0 %v1587
  %1603 = vmatpush.bf16.msra.mxu0 %v1586
  %1604 = vmatpush.bf16.msra.mxu0 %v1585
  %1605 = vmatpush.bf16.msra.mxu0 %v1584
  %1606 = vmatpush.bf16.msra.mxu0 %v1583
  %1607 = vmatmul.bf16.gmra.mxu0 %v1549
  %v1608 = vpop.f32.mrf.mxu0
  %v1609 = vadd.f32 %v1541, %v1608
  %v1610 = vpop.f32.mrf.mxu0
  %1611 = vdwg.mxu0
  %v1612 = vld [vmem:[#allocation3] sm:$0x6]
  %v1613 = vld [vmem:[#allocation3 + $0x4] sm:$0x6]
  %v1616 = vrot.slane %v1612, 2
  %v1617 = vrot.slane %v1613, 2
  %v1620 = vsel %vm48, %v1612, %v1616
  %v1622 = vsel %vm227, %v1612, %v1616
  %v1624 = vrot.slane %v1622, 2
  %v1627 = vsel %vm48, %v1613, %v1617
  %v1629 = vsel %vm227, %v1613, %v1617
  %v1631 = vrot.slane %v1629, 2
  %v1632 = vrot.slane %v1620, 7
  %v1633 = vrot.slane %v1632, 2
  %v1634 = vrot.slane %v1624, 7
  %v1635 = vsel %vm1175, %v1633, %v1634
  %v1636 = vrot.slane %v1627, 7
  %v1637 = vrot.slane %v1636, 2
  %v1638 = vrot.slane %v1631, 7
  %v1639 = vsel %vm1175, %v1637, %v1638
  %s1640 = scalar_lea.vmem %s8, 320
  %v1641 = vld [vmem:[%s1640] sm:$0xf]
  %v1642 = vld [vmem:[%s1640 + $0x4] sm:$0xf]
  %v1643 = vld [vmem:[%s1640 + $0x8] sm:$0xf]
  %v1644 = vld [vmem:[%s1640 + $0xc] sm:$0xf]
  %v1645 = vld [vmem:[%s1640 + $0x10] sm:$0xf]
  %v1646 = vld [vmem:[%s1640 + $0x14] sm:$0xf]
  %v1647 = vld [vmem:[%s1640 + $0x18] sm:$0xf]
  %v1648 = vld [vmem:[%s1640 + $0x1c] sm:$0xf]
  %v1649 = vld [vmem:[%s1640 + $0x20] sm:$0xf]
  %v1650 = vld [vmem:[%s1640 + $0x24] sm:$0xf]
  %v1651 = vld [vmem:[%s1640 + $0x28] sm:$0xf]
  %v1652 = vld [vmem:[%s1640 + $0x2c] sm:$0xf]
  %v1653 = vld [vmem:[%s1640 + $0x30] sm:$0xf]
  %v1654 = vld [vmem:[%s1640 + $0x34] sm:$0xf]
  %v1655 = vld [vmem:[%s1640 + $0x38] sm:$0xf]
  %v1656 = vld [vmem:[%s1640 + $0x3c] sm:$0xf]
  %1658 = vst [vmem:[#allocation1] ss:$4 sm:$0xff] %v1635
  %s1660 = scalar_lea.vmem [#allocation1], 1
  %1661 = vst [vmem:[%s1660] ss:$4 sm:$0xff] %v1639
  %v1662 = vld.sshfl [vmem:[#allocation1] sm:$0xff pattern:$0x73625140]
  %v1680 = vunpack.c.l.b16 %v1641
  %v1681 = vunpack.c.l.b16 %v1642
  %v1682 = vunpack.c.l.b16 %v1643
  %v1683 = vunpack.c.l.b16 %v1644
  %v1684 = vunpack.c.l.b16 %v1645
  %v1685 = vunpack.c.l.b16 %v1646
  %v1686 = vunpack.c.l.b16 %v1647
  %v1687 = vunpack.c.l.b16 %v1648
  %v1688 = vunpack.c.l.b16 %v1649
  %v1689 = vunpack.c.l.b16 %v1650
  %v1690 = vunpack.c.l.b16 %v1651
  %v1691 = vunpack.c.l.b16 %v1652
  %v1692 = vunpack.c.l.b16 %v1653
  %v1693 = vunpack.c.l.b16 %v1654
  %v1694 = vunpack.c.l.b16 %v1655
  %v1695 = vunpack.c.l.b16 %v1656
  %v1696 = vpack.c.b16 %v1681, %v1680
  %v1697 = vpack.c.b16 %v1683, %v1682
  %v1698 = vpack.c.b16 %v1685, %v1684
  %v1699 = vpack.c.b16 %v1687, %v1686
  %v1700 = vpack.c.b16 %v1689, %v1688
  %v1701 = vpack.c.b16 %v1691, %v1690
  %v1702 = vpack.c.b16 %v1693, %v1692
  %v1703 = vpack.c.b16 %v1695, %v1694
  %1712 = vmatpush.bf16.msra.mxu0 %v1703
  %1713 = vmatpush.bf16.msra.mxu0 %v1702
  %1714 = vmatpush.bf16.msra.mxu0 %v1701
  %1715 = vmatpush.bf16.msra.mxu0 %v1700
  %1716 = vmatpush.bf16.msra.mxu0 %v1699
  %1717 = vmatpush.bf16.msra.mxu0 %v1698
  %1718 = vmatpush.bf16.msra.mxu0 %v1697
  %1719 = vmatpush.bf16.msra.mxu0 %v1696
  %1720 = vmatmul.bf16.gmra.mxu0 %v1662
  %v1721 = vpop.f32.mrf.mxu0
  %v1722 = vadd.f32 0.0, %v1721
  %v1723 = vpop.f32.mrf.mxu0
  %1724 = vdwg.mxu0
  %v1725 = vadd.f32 %v1609, %v1722
  %s1726 = scalar_lea.vmem %s9, 1
  %v1727 = vld [vmem:[%s1726] sm:$0x1]
  %v1729 = vperm.slane %v1727, 0
  %v1731 = vadd.f32 %v1725, %v1729
  %v1732 = vmax.f32 %v1731, 0.0
  %v1733 = vpack.c.bf16 %v1732, %v1732
  %s1734 = scalar_lea.vmem %s10, 64
  %v1735 = vld [vmem:[%s1734] sm:$0xf]
  %v1736 = vld [vmem:[%s1734 + $0x4] sm:$0xf]
  %v1737 = vld [vmem:[%s1734 + $0x8] sm:$0xf]
  %v1738 = vld [vmem:[%s1734 + $0xc] sm:$0xf]
  %v1739 = vld [vmem:[%s1734 + $0x10] sm:$0xf]
  %v1740 = vld [vmem:[%s1734 + $0x14] sm:$0xf]
  %v1741 = vld [vmem:[%s1734 + $0x18] sm:$0xf]
  %v1742 = vld [vmem:[%s1734 + $0x1c] sm:$0xf]
  %v1743 = vld [vmem:[%s1734 + $0x20] sm:$0xf]
  %v1744 = vld [vmem:[%s1734 + $0x24] sm:$0xf]
  %v1745 = vld [vmem:[%s1734 + $0x28] sm:$0xf]
  %v1746 = vld [vmem:[%s1734 + $0x2c] sm:$0xf]
  %v1747 = vld [vmem:[%s1734 + $0x30] sm:$0xf]
  %v1748 = vld [vmem:[%s1734 + $0x34] sm:$0xf]
  %v1749 = vld [vmem:[%s1734 + $0x38] sm:$0xf]
  %v1750 = vld [vmem:[%s1734 + $0x3c] sm:$0xf]
  %v1767 = vunpack.c.l.b16 %v1735
  %v1768 = vunpack.c.l.b16 %v1736
  %v1769 = vunpack.c.l.b16 %v1737
  %v1770 = vunpack.c.l.b16 %v1738
  %v1771 = vunpack.c.l.b16 %v1739
  %v1772 = vunpack.c.l.b16 %v1740
  %v1773 = vunpack.c.l.b16 %v1741
  %v1774 = vunpack.c.l.b16 %v1742
  %v1775 = vunpack.c.l.b16 %v1743
  %v1776 = vunpack.c.l.b16 %v1744
  %v1777 = vunpack.c.l.b16 %v1745
  %v1778 = vunpack.c.l.b16 %v1746
  %v1779 = vunpack.c.l.b16 %v1747
  %v1780 = vunpack.c.l.b16 %v1748
  %v1781 = vunpack.c.l.b16 %v1749
  %v1782 = vunpack.c.l.b16 %v1750
  %v1783 = vpack.c.b16 %v1768, %v1767
  %v1784 = vpack.c.b16 %v1770, %v1769
  %v1785 = vpack.c.b16 %v1772, %v1771
  %v1786 = vpack.c.b16 %v1774, %v1773
  %v1787 = vpack.c.b16 %v1776, %v1775
  %v1788 = vpack.c.b16 %v1778, %v1777
  %v1789 = vpack.c.b16 %v1780, %v1779
  %v1790 = vpack.c.b16 %v1782, %v1781
  %1799 = vmatpush.bf16.msra.mxu0 %v1790
  %1800 = vmatpush.bf16.msra.mxu0 %v1789
  %1801 = vmatpush.bf16.msra.mxu0 %v1788
  %1802 = vmatpush.bf16.msra.mxu0 %v1787
  %1803 = vmatpush.bf16.msra.mxu0 %v1786
  %1804 = vmatpush.bf16.msra.mxu0 %v1785
  %1805 = vmatpush.bf16.msra.mxu0 %v1784
  %1806 = vmatpush.bf16.msra.mxu0 %v1783
  %1807 = vmatmul.bf16.gmra.mxu0 %v1733
  %v1808 = vpop.f32.mrf.mxu0
  %v1809 = vadd.f32 0.0, %v1808
  %v1810 = vpop.f32.mrf.mxu0
  %1811 = vdwg.mxu0
  %v1812 = vadd.f32 %v1359, %v1809
  %s1813 = scalar_lea.vmem %s11, 1
  %v1814 = vld [vmem:[%s1813] sm:$0x1]
  %v1816 = vperm.slane %v1814, 0
  %v1818 = vadd.f32 %v1812, %v1816
  %v1820 = vrot.slane %v1818, 4
  %1822 = vst [vmem:[%s12] sm:$0xf] %v1818
  %1823 = vst [vmem:[%s12 + $0x4] sm:$0xf] %v1820
  // Predicated region
  $region50: #{encoder_forward.1} parent=0 // pred_check
    _
  $region51: #{encoder_forward.1} parent=0 // pred_check_branch
    %1825 = sbr.rel (0) target = $region53
  $region52: #{encoder_forward.1} parent=0 // pred_region
    _
  $region53: #{encoder_forward.1} parent=0 // pred_fallthru
    _
  // Predicated region
  $region54: #{encoder_forward.1} parent=0 // pred_check
    _
  $region55: #{encoder_forward.1} parent=0 // pred_check_branch
    %1827 = sbr.rel (0) target = $region57
  $region56: #{encoder_forward.1} parent=0 // pred_region
    _
  $region57: #{encoder_forward.1} parent=0 // pred_fallthru
    _

</llo_original>
